<compile_context>
chip_gen: v7x
topology: tpu7x:2x2x1
jax: 0.10.0
libtpu: 0.0.40
codegen_flags: <defaults>
</compile_context>

<pallas_src>
import numpy as np
import jax
import jax.numpy as jnp
from jax import lax
from jax.experimental import pallas as pl
from jax.experimental.pallas import tpu as pltpu


def _round_up(n, m):
    return ((n + m - 1) // m) * m


# ---------------------------------------------------------------------------
# Parameter init (per-unit, PyTorch-style).
# ---------------------------------------------------------------------------
def init_region_params(key, num_units, dim_inputs, dim_hidden, dim_unit):
    ks = jax.random.split(key, 16)

    def u(k, shape, bound):
        return jax.random.uniform(k, shape, jnp.float32, -bound, bound)

    bi = 1.0 / (dim_inputs ** 0.5)
    bh = 1.0 / (dim_hidden ** 0.5)
    return dict(
        gamma=jnp.ones((1, dim_inputs), jnp.float32),
        beta=jnp.zeros((1, dim_inputs), jnp.float32),
        w1=u(ks[0], (num_units, dim_inputs, dim_hidden), bi),
        b1=u(ks[1], (num_units, 1, dim_hidden), bi),
        wir=u(ks[2], (num_units, dim_hidden, dim_hidden), bh),
        wiz=u(ks[3], (num_units, dim_hidden, dim_hidden), bh),
        win=u(ks[4], (num_units, dim_hidden, dim_hidden), bh),
        bir=u(ks[5], (num_units, 1, dim_hidden), bh),
        biz=u(ks[6], (num_units, 1, dim_hidden), bh),
        bin=u(ks[7], (num_units, 1, dim_hidden), bh),
        whr=u(ks[8], (num_units, dim_hidden, dim_hidden), bh),
        whz=u(ks[9], (num_units, dim_hidden, dim_hidden), bh),
        whn=u(ks[10], (num_units, dim_hidden, dim_hidden), bh),
        bhr=u(ks[11], (num_units, 1, dim_hidden), bh),
        bhz=u(ks[12], (num_units, 1, dim_hidden), bh),
        bhn=u(ks[13], (num_units, 1, dim_hidden), bh),
        w2=u(ks[14], (num_units, dim_hidden, dim_unit), bh),
        b2=u(ks[15], (num_units, 1, dim_unit), bh),
    )


# ---------------------------------------------------------------------------
# Packing: all regions' per-unit params -> one set of lane-dense operands.
#   Hidden lanes: region bands [hoff_r, hoff_r + round_up(NU_r*H,128)), unit-major.
#   Output lanes: region bands [ooff_r, ooff_r + round_up(NU_r*du,128)), unit-major.
#   Padded lanes are provably zero through the whole pipeline (zero weights+bias,
#   zero initial h => padded hidden stays 0, padded w2 rows are 0).
# ---------------------------------------------------------------------------
def pack_aggregator_params(raw_params, piece_dims_regions, dim_hidden, dim_unit):
    H, du = dim_hidden, dim_unit
    NU = [int(p["w1"].shape[0]) for p in raw_params]
    Din = [int(p["w1"].shape[1]) for p in raw_params]
    HW = [n * H for n in NU]
    Hp_r = [_round_up(w, 128) for w in HW]
    hoff = [0]
    for w in Hp_r[:-1]:
        hoff.append(hoff[-1] + w)
    Hp = int(sum(Hp_r))
    OW = [n * du for n in NU]
    Op_r = [_round_up(w, 128) for w in OW]
    ooff = [0]
    for w in Op_r[:-1]:
        ooff.append(ooff[-1] + w)
    Op = int(sum(Op_r))

    gamma_pieces, beta_pieces, w1_pieces = [], [], []
    for r, p in enumerate(raw_params):
        pn = {k: np.asarray(v, np.float32) for k, v in p.items()}
        w1 = np.transpose(pn["w1"], (1, 0, 2)).reshape(Din[r], HW[r])  # unit-major
        w1_full = np.zeros((Din[r], Hp), np.float32)
        w1_full[:, hoff[r]:hoff[r] + HW[r]] = w1
        off = 0
        for d in piece_dims_regions[r]:
            w1_pieces.append(jnp.asarray(w1_full[off:off + d], dtype=jnp.bfloat16))
            gamma_pieces.append(jnp.asarray(pn["gamma"][:, off:off + d]))
            beta_pieces.append(jnp.asarray(pn["beta"][:, off:off + d]))
            off += d
        assert off == Din[r]

    b1 = np.zeros((1, Hp), np.float32)
    wi = np.zeros((Hp, 3 * Hp), np.float32)
    bi = np.zeros((1, 3 * Hp), np.float32)
    wh = np.zeros((Hp, 3 * Hp), np.float32)
    bh = np.zeros((1, 3 * Hp), np.float32)
    w2 = np.zeros((Hp, Op), np.float32)
    b2 = np.zeros((1, Op), np.float32)

    gi_names = ("wir", "wiz", "win")
    gib_names = ("bir", "biz", "bin")
    gh_names = ("whr", "whz", "whn")
    ghb_names = ("bhr", "bhz", "bhn")
    for r, p in enumerate(raw_params):
        pn = {k: np.asarray(v, np.float32) for k, v in p.items()}
        b1[0, hoff[r]:hoff[r] + HW[r]] = pn["b1"].reshape(HW[r])
        for u in range(NU[r]):
            rs = hoff[r] + u * H
            for g in range(3):                      # gate order [r | z | n]
                cs = g * Hp + hoff[r] + u * H
                wi[rs:rs + H, cs:cs + H] = pn[gi_names[g]][u]
                wh[rs:rs + H, cs:cs + H] = pn[gh_names[g]][u]
                bi[0, cs:cs + H] = pn[gib_names[g]][u, 0]
                bh[0, cs:cs + H] = pn[ghb_names[g]][u, 0]
            os_ = ooff[r] + u * du
            w2[rs:rs + H, os_:os_ + du] = pn["w2"][u]
            b2[0, os_:os_ + du] = pn["b2"][u, 0]

    packed = dict(
        gamma_pieces=gamma_pieces, beta_pieces=beta_pieces, w1_pieces=w1_pieces,
        b1=jnp.asarray(b1),
        wi=jnp.asarray(wi, dtype=jnp.bfloat16), bi=jnp.asarray(bi),
        wh=jnp.asarray(wh, dtype=jnp.bfloat16), bh=jnp.asarray(bh),
        w2=jnp.asarray(w2, dtype=jnp.bfloat16), b2=jnp.asarray(b2),
    )
    layout = dict(Hp=Hp, Op=Op, Hp_r=Hp_r, Op_r=Op_r, hoff=hoff, ooff=ooff)
    return packed, layout


# ---------------------------------------------------------------------------
# Kernel: whole multi-region Aggregator, T steps on a 1-D ("arbitrary") grid.
# Weights have constant index maps -> DMA'd to VMEM once, resident across T.
# ---------------------------------------------------------------------------
def _make_aggregator_kernel(pieces_per_region, din_regions, hp_total):
    n_regions = len(pieces_per_region)
    n_pieces = int(sum(pieces_per_region))
    Hp = hp_total

    def kernel(*refs):
        i = 0
        x_refs = refs[i:i + n_pieces]; i += n_pieces
        gamma_refs = refs[i:i + n_pieces]; i += n_pieces
        beta_refs = refs[i:i + n_pieces]; i += n_pieces
        w1_refs = refs[i:i + n_pieces]; i += n_pieces
        (b1_ref, wi_ref, bi_ref, wh_ref, bh_ref, w2_ref, b2_ref, h0_ref) = refs[i:i + 8]
        i += 8
        out_ref, hstate_ref = refs[i], refs[i + 1]

        t = pl.program_id(0)

        # Hidden state lives in the constant-index output block across the whole
        # T grid (never leaves VMEM between steps); seed it from h0 on step 0.
        @pl.when(t == 0)
        def _init():
            hstate_ref[...] = h0_ref[...]

        # ---- per-region LayerNorm (eps=1e-5) + first UnitWiseLinear, fused ----
        # torch.cat([x_0, x_1]) is folded in: every piece is normalized with the
        # region's combined mean/var and dotted against its own row-slice of the
        # (region-banded, full lane width) w1.  bf16 operands, f32 accumulation.
        y = None
        pbase = 0
        for reg in range(n_regions):
            npc = pieces_per_region[reg]
            xs = [x_refs[pbase + j][0].astype(jnp.float32) for j in range(npc)]
            inv_d = 1.0 / float(din_regions[reg])
            tot = xs[0].sum(axis=-1, keepdims=True)
            for xp in xs[1:]:
                tot = tot + xp.sum(axis=-1, keepdims=True)
            mean = tot * inv_d
            cents = [xp - mean for xp in xs]
            ssq = jnp.square(cents[0]).sum(axis=-1, keepdims=True)
            for c in cents[1:]:
                ssq = ssq + jnp.square(c).sum(axis=-1, keepdims=True)
            inv_std = lax.rsqrt(ssq * inv_d + 1e-5)
            for j, c in enumerate(cents):
                xn = c * inv_std * gamma_refs[pbase + j][...] + beta_refs[pbase + j][...]
                part = jnp.dot(xn.astype(jnp.bfloat16), w1_refs[pbase + j][...],
                               preferred_element_type=jnp.float32)
                y = part if y is None else y + part
            pbase += npc
        y = y + b1_ref[...]                                        # (B, Hp) f32

        # ---- UnitWiseGRU (PyTorch GRUCell math), block-diagonal packed ----
        # Kept as two gate-major fused matmuls (gi, gh).  Folding the r/z gates
        # into a single [y|h] matmul would raise the dot count (2 -> 3) at equal
        # FLOPs here, so the fused 2-dot form is retained.
        h = hstate_ref[...]
        gi = jnp.dot(y.astype(jnp.bfloat16), wi_ref[...],
                     preferred_element_type=jnp.float32) + bi_ref[...]
        gh = jnp.dot(h.astype(jnp.bfloat16), wh_ref[...],
                     preferred_element_type=jnp.float32) + bh_ref[...]
        r_g = jax.nn.sigmoid(gi[:, :Hp] + gh[:, :Hp])
        z_g = jax.nn.sigmoid(gi[:, Hp:2 * Hp] + gh[:, Hp:2 * Hp])
        n_g = jnp.tanh(gi[:, 2 * Hp:] + r_g * gh[:, 2 * Hp:])
        h_new = (1.0 - z_g) * n_g + z_g * h
        hstate_ref[...] = h_new

        # ---- second UnitWiseLinear (block-diagonal), lane-dense output slab ----
        out = jnp.dot(h_new.astype(jnp.bfloat16), w2_ref[...],
                      preferred_element_type=jnp.float32) + b2_ref[...]
        out_ref[0] = out.astype(out_ref.dtype)

    return kernel


# ---------------------------------------------------------------------------
# Pure-JAX per-unit reference (fp32 HIGHEST) for a correctness sanity check.
# ---------------------------------------------------------------------------
def aggregator_region_reference(x, p, h0):
    """x: (B, Din); p: raw per-unit params; h0: (B, NU, H).
    Returns (out (B, NU, du), h_new (B, NU, H))."""
    hi = jax.lax.Precision.HIGHEST
    xf = x.astype(jnp.float32)
    mean = jnp.mean(xf, axis=-1, keepdims=True)
    var = jnp.mean(jnp.square(xf - mean), axis=-1, keepdims=True)
    xn = (xf - mean) * lax.rsqrt(var + 1e-5) * p["gamma"] + p["beta"]
    NU, _, H = p["w1"].shape
    outs, hs = [], []
    for u in range(NU):
        y = jnp.dot(xn, p["w1"][u], precision=hi) + p["b1"][u]
        h = h0[:, u, :]
        i_r = jnp.dot(y, p["wir"][u], precision=hi) + p["bir"][u]
        i_z = jnp.dot(y, p["wiz"][u], precision=hi) + p["biz"][u]
        i_n = jnp.dot(y, p["win"][u], precision=hi) + p["bin"][u]
        h_r = jnp.dot(h, p["whr"][u], precision=hi) + p["bhr"][u]
        h_z = jnp.dot(h, p["whz"][u], precision=hi) + p["bhz"][u]
        h_n = jnp.dot(h, p["whn"][u], precision=hi) + p["bhn"][u]
        r = jax.nn.sigmoid(i_r + h_r)
        z = jax.nn.sigmoid(i_z + h_z)
        n = jnp.tanh(i_n + r * h_n)
        h_new = (1.0 - z) * n + z * h
        hs.append(h_new)
        outs.append(jnp.dot(h_new, p["w2"][u], precision=hi) + p["b2"][u])
    return jnp.stack(outs, axis=1), jnp.stack(hs, axis=1)


# ---------------------------------------------------------------------------
# Aggregator wrapper.
# ---------------------------------------------------------------------------
class AggregatorPallas:
    def __init__(self, num_units_regions, dim_unit, dim_outputs_regions,
                 dim_hidden, max_bptt, key):
        self.num_units_regions = list(num_units_regions)
        self.R = len(self.num_units_regions)
        self.dim_unit = dim_unit
        self.dim_hidden = dim_hidden
        # TODO(synk): max_bptt only truncates backprop in the PyTorch GRU; no forward effect.
        self.max_bptt = max_bptt

        dor = list(dim_outputs_regions)
        self.piece_dims = []            # per region: dims of its concat pieces
        for r in range(self.R):
            dims = [dor[r]]
            if r + 1 < self.R:
                dims.append(dor[r + 1])
            self.piece_dims.append(dims)
        self.dim_inputs_regions = [sum(d) for d in self.piece_dims]

        keys = jax.random.split(key, self.R)
        self.raw_params = [
            init_region_params(k, nu, di, dim_hidden, dim_unit)
            for k, nu, di in zip(keys, self.num_units_regions, self.dim_inputs_regions)
        ]
        self.packed, layout = pack_aggregator_params(
            self.raw_params, self.piece_dims, dim_hidden, dim_unit)
        self.Hp, self.Op = layout["Hp"], layout["Op"]
        self.hoff, self.ooff = layout["hoff"], layout["ooff"]

        self.h = None                   # packed GRU hidden state, (B, Hp) f32
        self._step = jax.jit(self._step_impl)
        self._seq = jax.jit(self._seq_impl)

    # -- canonical flat piece order: region 0: (x0, x1_next), ..., last: (x0,) --
    def _pieces(self, x0, x1):
        x1s = list(x1[1:]) + [None]
        pieces = []
        for r in range(self.R):
            pieces.append(x0[r])
            if x1s[r] is not None:
                pieces.append(x1s[r])
        return pieces

    def _core(self, pieces_seq, packed, h0):
        """Run T steps of the whole multi-region Aggregator in ONE pallas_call."""
        pieces_seq = [lax.stop_gradient(p) for p in pieces_seq]      # x.detach()
        T, B = pieces_seq[0].shape[0], pieces_seq[0].shape[1]
        Hp, Op = self.Hp, self.Op
        P = len(pieces_seq)

        inputs, in_specs = [], []

        def add_per_step(arr):          # (T, B, d): a new block every grid step
            inputs.append(arr)
            in_specs.append(pl.BlockSpec((1,) + arr.shape[1:], lambda t: (t, 0, 0)))

        def add_resident(arr):          # constant index map: DMA'd once, kept in VMEM
            inputs.append(arr)
            in_specs.append(pl.BlockSpec(arr.shape, lambda t: (0, 0)))

        for xp in pieces_seq:
            add_per_step(xp)
        for g in packed["gamma_pieces"]:
            add_resident(g)
        for b in packed["beta_pieces"]:
            add_resident(b)
        for w in packed["w1_pieces"]:
            add_resident(w)
        for name in ("b1", "wi", "bi", "wh", "bh", "w2", "b2"):
            add_resident(packed[name])
        h0_index = len(inputs)          # alias index derived programmatically
        add_resident(h0)

        kernel = _make_aggregator_kernel(
            tuple(len(d) for d in self.piece_dims),
            tuple(self.dim_inputs_regions), Hp)

        # Advisory cost estimate + explicit VMEM budget (blocked operands land in
        # VMEM by default; the limit protects against scoped-VMEM defaults if the
        # config is scaled up).
        flops_step = sum(2 * B * xp.shape[-1] * Hp for xp in pieces_seq)
        flops_step += 2 * B * Hp * 3 * Hp + 2 * B * Hp * Op
        transc = T * B * (3 * Hp + self.R)
        weight_bytes = sum(int(np.prod(a.shape)) * a.dtype.itemsize for a in inputs[P:])
        step_io_bytes = (sum(int(np.prod(xp.shape[1:])) * 4 for xp in pieces_seq)
                         + B * Op * 4)
        cost = pl.CostEstimate(
            flops=int(T * flops_step), transcendentals=int(transc),
            bytes_accessed=int(weight_bytes + T * step_io_bytes + 2 * B * Hp * 4))
        vmem_limit = int(min(64 * 2 ** 20,
                             max(8 * 2 ** 20,
                                 3 * weight_bytes + 16 * step_io_bytes + (2 << 20))))

        out_seq, h_new = pl.pallas_call(
            kernel,
            grid=(T,),
            in_specs=in_specs,
            out_specs=[pl.BlockSpec((1, B, Op), lambda t: (t, 0, 0)),
                       pl.BlockSpec((B, Hp), lambda t: (0, 0))],
            out_shape=(jax.ShapeDtypeStruct((T, B, Op), jnp.float32),
                       jax.ShapeDtypeStruct((B, Hp), jnp.float32)),
            input_output_aliases={h0_index: 1},     # hidden state updated in place
            compiler_params=pltpu.CompilerParams(
                dimension_semantics=("arbitrary",),  # sequential: GRU state over T
                vmem_limit_bytes=vmem_limit),
            cost_estimate=cost,
        )(*inputs)

        results = []
        for r in range(self.R):
            nu, du = self.num_units_regions[r], self.dim_unit
            off = self.ooff[r]
            results.append(out_seq[:, :, off:off + nu * du].reshape(T, B, nu, du))
        return results, h_new

    def _step_impl(self, pieces, packed, h0):
        seq = [p[None] for p in pieces]                 # T = 1
        res, h_new = self._core(seq, packed, h0)
        return [r[0] for r in res], h_new

    def _seq_impl(self, pieces_seq, packed, h0):
        return self._core(pieces_seq, packed, h0)

    def __call__(self, x0, x1):
        pieces = self._pieces(x0, x1)
        B = pieces[0].shape[0]
        if self.h is None:
            self.h = jnp.zeros((B, self.Hp), jnp.float32)
        results, h_new = self._step(pieces, self.packed, self.h)
        self.h = h_new
        return results

    def forward_sequence(self, x0_seq, x1_seq):
        """Time-batched forward: x0_seq / x1_seq are lists of (T, B, d) arrays.
        Runs all T steps in one pallas_call so the packed weights are DMA'd to
        VMEM once and stay resident across the whole sequence."""
        x1s = list(x1_seq[1:]) + [None]
        pieces_seq = []
        for r in range(self.R):
            pieces_seq.append(x0_seq[r])
            if x1s[r] is not None:
                pieces_seq.append(x1s[r])
        B = pieces_seq[0].shape[1]
        if self.h is None:
            self.h = jnp.zeros((B, self.Hp), jnp.float32)
        results, h_new = self._seq(pieces_seq, self.packed, self.h)
        self.h = h_new
        return results

    def reset(self):
        self.h = None


if __name__ == "__main__":
    key = jax.random.PRNGKey(0)
    keys = jax.random.split(key, 9)
    k_params = keys[0]

    # Small config consistent with the module.
    num_units_regions = [4, 3]
    dim_unit = 8
    dim_outputs_regions = [16, 8]
    dim_hidden = 32
    max_bptt = 4
    batch = 2

    agg = AggregatorPallas(num_units_regions, dim_unit, dim_outputs_regions,
                           dim_hidden, max_bptt, k_params)

    # Two timesteps of per-region activations (x0 / x1 each: [(B,16), (B,8)]).
    x0_t = [[jax.random.normal(keys[1], (batch, 16), jnp.float32),
             jax.random.normal(keys[2], (batch, 8), jnp.float32)],
            [jax.random.normal(keys[5], (batch, 16), jnp.float32),
             jax.random.normal(keys[6], (batch, 8), jnp.float32)]]
    x1_t = [[jax.random.normal(keys[3], (batch, 16), jnp.float32),
             jax.random.normal(keys[4], (batch, 8), jnp.float32)],
            [jax.random.normal(keys[7], (batch, 16), jnp.float32),
             jax.random.normal(keys[8], (batch, 8), jnp.float32)]]

    # fp32 HIGHEST per-unit reference over both (stateful) steps.
    ref_h = [jnp.zeros((batch, nu, dim_hidden), jnp.float32) for nu in num_units_regions]
    ref_outs = []
    for t in range(2):
        x_cat0 = jnp.concatenate([x0_t[t][0], x1_t[t][1]], axis=1)   # region 0 (B, 24)
        x_cat1 = x0_t[t][1]                                          # region 1 (B, 8)
        o0, ref_h[0] = aggregator_region_reference(x_cat0, agg.raw_params[0], ref_h[0])
        o1, ref_h[1] = aggregator_region_reference(x_cat1, agg.raw_params[1], ref_h[1])
        ref_outs.append([o0, o1])

    # --- stateful per-step path (one fused pallas_call per step) ---
    step_outs = []
    for t in range(2):
        res = agg(x0_t[t], x1_t[t])
        res = [jax.block_until_ready(r) for r in res]
        step_outs.append(res)

    # Tolerance widened vs. the fp32 reference because the kernel uses bf16
    # weights/matmul operands (f32 accumulation); observed error is ~1e-2.
    tol = 1e-1
    for t in range(2):
        for r in range(2):
            assert step_outs[t][r].shape == (batch, num_units_regions[r], dim_unit)
            assert bool(jnp.all(jnp.isfinite(step_outs[t][r])))
            err = float(jnp.max(jnp.abs(step_outs[t][r] - ref_outs[t][r])))
            assert err < tol, (t, r, err)

    # --- sequence path (T-grid; weights DMA'd once, resident across steps) ---
    agg.reset()
    x0_seq = [jnp.stack([x0_t[0][i], x0_t[1][i]]) for i in range(2)]   # (T=2, B, d)
    x1_seq = [jnp.stack([x1_t[0][i], x1_t[1][i]]) for i in range(2)]
    seq_outs = agg.forward_sequence(x0_seq, x1_seq)
    seq_outs = [jax.block_until_ready(r) for r in seq_outs]
    for r in range(2):
        assert seq_outs[r].shape == (2, batch, num_units_regions[r], dim_unit)
        for t in range(2):
            err = float(jnp.max(jnp.abs(seq_outs[r][t] - step_outs[t][r])))
            assert err < 1e-4, (r, t, err)   # same kernel math step-by-step

    print("KERNEL_OK")
</pallas_src>

<mosaic_0001>
module attributes {stable_mosaic.version = 11 : i64} {
  func.func @kernel(%arg0: i32, %arg1: memref<1x2x16xf32, #tpu.memory_space<vmem>>, %arg2: memref<1x2x8xf32, #tpu.memory_space<vmem>>, %arg3: memref<1x2x8xf32, #tpu.memory_space<vmem>>, %arg4: memref<1x16xf32, #tpu.memory_space<vmem>>, %arg5: memref<1x8xf32, #tpu.memory_space<vmem>>, %arg6: memref<1x8xf32, #tpu.memory_space<vmem>>, %arg7: memref<1x16xf32, #tpu.memory_space<vmem>>, %arg8: memref<1x8xf32, #tpu.memory_space<vmem>>, %arg9: memref<1x8xf32, #tpu.memory_space<vmem>>, %arg10: memref<16x256xbf16, #tpu.memory_space<vmem>>, %arg11: memref<8x256xbf16, #tpu.memory_space<vmem>>, %arg12: memref<8x256xbf16, #tpu.memory_space<vmem>>, %arg13: memref<1x256xf32, #tpu.memory_space<vmem>>, %arg14: memref<256x768xbf16, #tpu.memory_space<vmem>>, %arg15: memref<1x768xf32, #tpu.memory_space<vmem>>, %arg16: memref<256x768xbf16, #tpu.memory_space<vmem>>, %arg17: memref<1x768xf32, #tpu.memory_space<vmem>>, %arg18: memref<256x256xbf16, #tpu.memory_space<vmem>>, %arg19: memref<1x256xf32, #tpu.memory_space<vmem>>, %arg20: memref<2x256xf32, #tpu.memory_space<vmem>>, %arg21: memref<1x2x256xf32, #tpu.memory_space<vmem>>, %arg22: memref<2x256xf32, #tpu.memory_space<vmem>>) attributes {dimension_semantics = [#tpu.dimension_semantics<arbitrary>], iteration_bounds = array<i64: 1>, scalar_prefetch = 0 : i64, scratch_operands = 0 : i64, tpu.core_type = #tpu.core_type<tc>, window_params = [{transform_indices = @transform_0, window_bounds = array<i64: 1, 2, 16>}, {transform_indices = @transform_1, window_bounds = array<i64: 1, 2, 8>}, {transform_indices = @transform_2, window_bounds = array<i64: 1, 2, 8>}, {pipeline_mode = #tpu.pipeline_mode<synchronous>, transform_indices = @transform_3, window_bounds = array<i64: 1, 16>}, {pipeline_mode = #tpu.pipeline_mode<synchronous>, transform_indices = @transform_4, window_bounds = array<i64: 1, 8>}, {pipeline_mode = #tpu.pipeline_mode<synchronous>, transform_indices = @transform_5, window_bounds = array<i64: 1, 8>}, {pipeline_mode = #tpu.pipeline_mode<synchronous>, transform_indices = @transform_6, window_bounds = array<i64: 1, 16>}, {pipeline_mode = #tpu.pipeline_mode<synchronous>, transform_indices = @transform_7, window_bounds = array<i64: 1, 8>}, {pipeline_mode = #tpu.pipeline_mode<synchronous>, transform_indices = @transform_8, window_bounds = array<i64: 1, 8>}, {pipeline_mode = #tpu.pipeline_mode<synchronous>, transform_indices = @transform_9, window_bounds = array<i64: 16, 256>}, {pipeline_mode = #tpu.pipeline_mode<synchronous>, transform_indices = @transform_10, window_bounds = array<i64: 8, 256>}, {pipeline_mode = #tpu.pipeline_mode<synchronous>, transform_indices = @transform_11, window_bounds = array<i64: 8, 256>}, {pipeline_mode = #tpu.pipeline_mode<synchronous>, transform_indices = @transform_12, window_bounds = array<i64: 1, 256>}, {pipeline_mode = #tpu.pipeline_mode<synchronous>, transform_indices = @transform_13, window_bounds = array<i64: 256, 768>}, {pipeline_mode = #tpu.pipeline_mode<synchronous>, transform_indices = @transform_14, window_bounds = array<i64: 1, 768>}, {pipeline_mode = #tpu.pipeline_mode<synchronous>, transform_indices = @transform_15, window_bounds = array<i64: 256, 768>}, {pipeline_mode = #tpu.pipeline_mode<synchronous>, transform_indices = @transform_16, window_bounds = array<i64: 1, 768>}, {pipeline_mode = #tpu.pipeline_mode<synchronous>, transform_indices = @transform_17, window_bounds = array<i64: 256, 256>}, {pipeline_mode = #tpu.pipeline_mode<synchronous>, transform_indices = @transform_18, window_bounds = array<i64: 1, 256>}, {pipeline_mode = #tpu.pipeline_mode<synchronous>, transform_indices = @transform_19, window_bounds = array<i64: 2, 256>}, {transform_indices = @transform_20, window_bounds = array<i64: 1, 2, 256>}, {pipeline_mode = #tpu.pipeline_mode<synchronous>, transform_indices = @transform_21, window_bounds = array<i64: 2, 256>}]} {
    %c0_i32 = arith.constant 0 : i32
    %0 = arith.cmpi eq, %arg0, %c0_i32 : i32
    %1 = arith.extui %0 : i1 to i32
    %c0_i32_0 = arith.constant 0 : i32
    %2 = arith.cmpi ne, %1, %c0_i32_0 : i32
    scf.if %2 {
      %c0_68 = arith.constant 0 : index
      %c0_69 = arith.constant 0 : index
      %133 = vector.load %arg20[%c0_68, %c0_69] : memref<2x256xf32, #tpu.memory_space<vmem>>, vector<2x256xf32>
      %c0_70 = arith.constant 0 : index
      %c0_71 = arith.constant 0 : index
      %134 = vector.load %arg22[%c0_70, %c0_71] : memref<2x256xf32, #tpu.memory_space<vmem>>, vector<2x256xf32>
      tpu.vector_store %arg22[%c0_70, %c0_71], %133 {strides = array<i32>} : memref<2x256xf32, #tpu.memory_space<vmem>>, vector<2x256xf32>,
    } else {
    }
    %c0 = arith.constant 0 : index
    %c0_1 = arith.constant 0 : index
    %c0_2 = arith.constant 0 : index
    %3 = vector.load %arg1[%c0, %c0_1, %c0_2] : memref<1x2x16xf32, #tpu.memory_space<vmem>>, vector<1x2x16xf32>
    %4 = vector.shape_cast %3 : vector<1x2x16xf32> to vector<2x16xf32>
    %c0_3 = arith.constant 0 : index
    %c0_4 = arith.constant 0 : index
    %c0_5 = arith.constant 0 : index
    %5 = vector.load %arg2[%c0_3, %c0_4, %c0_5] : memref<1x2x8xf32, #tpu.memory_space<vmem>>, vector<1x2x8xf32>
    %6 = vector.shape_cast %5 : vector<1x2x8xf32> to vector<2x8xf32>
    %cst = arith.constant dense<0.000000e+00> : vector<2xf32>
    %7 = vector.multi_reduction <add>, %4, %cst [1] : vector<2x16xf32> to vector<2xf32>
    %8 = vector.shape_cast %7 : vector<2xf32> to vector<2x1xf32>
    %cst_6 = arith.constant dense<0.000000e+00> : vector<2xf32>
    %9 = vector.multi_reduction <add>, %6, %cst_6 [1] : vector<2x8xf32> to vector<2xf32>
    %10 = vector.shape_cast %9 : vector<2xf32> to vector<2x1xf32>
    %11 = arith.addf %8, %10 : vector<2x1xf32>
    %cst_7 = arith.constant 0.0416666679 : f32
    %12 = vector.broadcast %cst_7 : f32 to vector<2x1xf32>
    %13 = arith.mulf %11, %12 : vector<2x1xf32>
    %14 = vector.broadcast %13 : vector<2x1xf32> to vector<2x16xf32>
    %15 = arith.subf %4, %14 : vector<2x16xf32>
    %16 = vector.broadcast %13 : vector<2x1xf32> to vector<2x8xf32>
    %17 = arith.subf %6, %16 : vector<2x8xf32>
    %18 = arith.mulf %15, %15 : vector<2x16xf32>
    %cst_8 = arith.constant dense<0.000000e+00> : vector<2xf32>
    %19 = vector.multi_reduction <add>, %18, %cst_8 [1] : vector<2x16xf32> to vector<2xf32>
    %20 = vector.shape_cast %19 : vector<2xf32> to vector<2x1xf32>
    %21 = arith.mulf %17, %17 : vector<2x8xf32>
    %cst_9 = arith.constant dense<0.000000e+00> : vector<2xf32>
    %22 = vector.multi_reduction <add>, %21, %cst_9 [1] : vector<2x8xf32> to vector<2xf32>
    %23 = vector.shape_cast %22 : vector<2xf32> to vector<2x1xf32>
    %24 = arith.addf %20, %23 : vector<2x1xf32>
    %cst_10 = arith.constant 0.0416666679 : f32
    %25 = vector.broadcast %cst_10 : f32 to vector<2x1xf32>
    %26 = arith.mulf %24, %25 : vector<2x1xf32>
    %cst_11 = arith.constant 9.99999974E-6 : f32
    %27 = vector.broadcast %cst_11 : f32 to vector<2x1xf32>
    %28 = arith.addf %26, %27 : vector<2x1xf32>
    %29 = math.rsqrt %28 : vector<2x1xf32>
    %30 = vector.broadcast %29 : vector<2x1xf32> to vector<2x16xf32>
    %31 = arith.mulf %15, %30 : vector<2x16xf32>
    %c0_12 = arith.constant 0 : index
    %c0_13 = arith.constant 0 : index
    %32 = vector.load %arg4[%c0_12, %c0_13] : memref<1x16xf32, #tpu.memory_space<vmem>>, vector<1x16xf32>
    %33 = vector.broadcast %32 : vector<1x16xf32> to vector<2x16xf32>
    %34 = arith.mulf %31, %33 : vector<2x16xf32>
    %c0_14 = arith.constant 0 : index
    %c0_15 = arith.constant 0 : index
    %35 = vector.load %arg7[%c0_14, %c0_15] : memref<1x16xf32, #tpu.memory_space<vmem>>, vector<1x16xf32>
    %36 = vector.broadcast %35 : vector<1x16xf32> to vector<2x16xf32>
    %37 = arith.addf %34, %36 : vector<2x16xf32>
    %38 = arith.truncf %37 : vector<2x16xf32> to vector<2x16xbf16>
    %c0_16 = arith.constant 0 : index
    %c0_17 = arith.constant 0 : index
    %39 = vector.load %arg10[%c0_16, %c0_17] : memref<16x256xbf16, #tpu.memory_space<vmem>>, vector<16x256xbf16>
    %cst_18 = arith.constant dense<0.000000e+00> : vector<2x256xf32>
    %40 = tpu.matmul %38, %39, %cst_18 {dimension_numbers = #tpu.dot_dimension_numbers<[1], [0], [0], [1], [0, 0, 1, 1], [], []>} : vector<2x16xbf16>, vector<16x256xbf16>, vector<2x256xf32> -> vector<2x256xf32>
    %41 = vector.broadcast %29 : vector<2x1xf32> to vector<2x8xf32>
    %42 = arith.mulf %17, %41 : vector<2x8xf32>
    %c0_19 = arith.constant 0 : index
    %c0_20 = arith.constant 0 : index
    %43 = vector.load %arg5[%c0_19, %c0_20] : memref<1x8xf32, #tpu.memory_space<vmem>>, vector<1x8xf32>
    %44 = vector.broadcast %43 : vector<1x8xf32> to vector<2x8xf32>
    %45 = arith.mulf %42, %44 : vector<2x8xf32>
    %c0_21 = arith.constant 0 : index
    %c0_22 = arith.constant 0 : index
    %46 = vector.load %arg8[%c0_21, %c0_22] : memref<1x8xf32, #tpu.memory_space<vmem>>, vector<1x8xf32>
    %47 = vector.broadcast %46 : vector<1x8xf32> to vector<2x8xf32>
    %48 = arith.addf %45, %47 : vector<2x8xf32>
    %49 = arith.truncf %48 : vector<2x8xf32> to vector<2x8xbf16>
    %c0_23 = arith.constant 0 : index
    %c0_24 = arith.constant 0 : index
    %50 = vector.load %arg11[%c0_23, %c0_24] : memref<8x256xbf16, #tpu.memory_space<vmem>>, vector<8x256xbf16>
    %cst_25 = arith.constant dense<0.000000e+00> : vector<2x256xf32>
    %51 = tpu.matmul %49, %50, %cst_25 {dimension_numbers = #tpu.dot_dimension_numbers<[1], [0], [0], [1], [0, 0, 1, 1], [], []>} : vector<2x8xbf16>, vector<8x256xbf16>, vector<2x256xf32> -> vector<2x256xf32>
    %52 = arith.addf %40, %51 : vector<2x256xf32>
    %c0_26 = arith.constant 0 : index
    %c0_27 = arith.constant 0 : index
    %c0_28 = arith.constant 0 : index
    %53 = vector.load %arg3[%c0_26, %c0_27, %c0_28] : memref<1x2x8xf32, #tpu.memory_space<vmem>>, vector<1x2x8xf32>
    %54 = vector.shape_cast %53 : vector<1x2x8xf32> to vector<2x8xf32>
    %cst_29 = arith.constant dense<0.000000e+00> : vector<2xf32>
    %55 = vector.multi_reduction <add>, %54, %cst_29 [1] : vector<2x8xf32> to vector<2xf32>
    %56 = vector.shape_cast %55 : vector<2xf32> to vector<2x1xf32>
    %cst_30 = arith.constant 1.250000e-01 : f32
    %57 = vector.broadcast %cst_30 : f32 to vector<2x1xf32>
    %58 = arith.mulf %56, %57 : vector<2x1xf32>
    %59 = vector.broadcast %58 : vector<2x1xf32> to vector<2x8xf32>
    %60 = arith.subf %54, %59 : vector<2x8xf32>
    %61 = arith.mulf %60, %60 : vector<2x8xf32>
    %cst_31 = arith.constant dense<0.000000e+00> : vector<2xf32>
    %62 = vector.multi_reduction <add>, %61, %cst_31 [1] : vector<2x8xf32> to vector<2xf32>
    %63 = vector.shape_cast %62 : vector<2xf32> to vector<2x1xf32>
    %cst_32 = arith.constant 1.250000e-01 : f32
    %64 = vector.broadcast %cst_32 : f32 to vector<2x1xf32>
    %65 = arith.mulf %63, %64 : vector<2x1xf32>
    %cst_33 = arith.constant 9.99999974E-6 : f32
    %66 = vector.broadcast %cst_33 : f32 to vector<2x1xf32>
    %67 = arith.addf %65, %66 : vector<2x1xf32>
    %68 = math.rsqrt %67 : vector<2x1xf32>
    %69 = vector.broadcast %68 : vector<2x1xf32> to vector<2x8xf32>
    %70 = arith.mulf %60, %69 : vector<2x8xf32>
    %c0_34 = arith.constant 0 : index
    %c0_35 = arith.constant 0 : index
    %71 = vector.load %arg6[%c0_34, %c0_35] : memref<1x8xf32, #tpu.memory_space<vmem>>, vector<1x8xf32>
    %72 = vector.broadcast %71 : vector<1x8xf32> to vector<2x8xf32>
    %73 = arith.mulf %70, %72 : vector<2x8xf32>
    %c0_36 = arith.constant 0 : index
    %c0_37 = arith.constant 0 : index
    %74 = vector.load %arg9[%c0_36, %c0_37] : memref<1x8xf32, #tpu.memory_space<vmem>>, vector<1x8xf32>
    %75 = vector.broadcast %74 : vector<1x8xf32> to vector<2x8xf32>
    %76 = arith.addf %73, %75 : vector<2x8xf32>
    %77 = arith.truncf %76 : vector<2x8xf32> to vector<2x8xbf16>
    %c0_38 = arith.constant 0 : index
    %c0_39 = arith.constant 0 : index
    %78 = vector.load %arg12[%c0_38, %c0_39] : memref<8x256xbf16, #tpu.memory_space<vmem>>, vector<8x256xbf16>
    %cst_40 = arith.constant dense<0.000000e+00> : vector<2x256xf32>
    %79 = tpu.matmul %77, %78, %cst_40 {dimension_numbers = #tpu.dot_dimension_numbers<[1], [0], [0], [1], [0, 0, 1, 1], [], []>} : vector<2x8xbf16>, vector<8x256xbf16>, vector<2x256xf32> -> vector<2x256xf32>
    %80 = arith.addf %52, %79 : vector<2x256xf32>
    %c0_41 = arith.constant 0 : index
    %c0_42 = arith.constant 0 : index
    %81 = vector.load %arg13[%c0_41, %c0_42] : memref<1x256xf32, #tpu.memory_space<vmem>>, vector<1x256xf32>
    %82 = vector.broadcast %81 : vector<1x256xf32> to vector<2x256xf32>
    %83 = arith.addf %80, %82 : vector<2x256xf32>
    %c0_43 = arith.constant 0 : index
    %c0_44 = arith.constant 0 : index
    %84 = vector.load %arg22[%c0_43, %c0_44] : memref<2x256xf32, #tpu.memory_space<vmem>>, vector<2x256xf32>
    %85 = arith.truncf %83 : vector<2x256xf32> to vector<2x256xbf16>
    %c0_45 = arith.constant 0 : index
    %c0_46 = arith.constant 0 : index
    %86 = vector.load %arg14[%c0_45, %c0_46] : memref<256x768xbf16, #tpu.memory_space<vmem>>, vector<256x768xbf16>
    %cst_47 = arith.constant dense<0.000000e+00> : vector<2x768xf32>
    %87 = tpu.matmul %85, %86, %cst_47 {dimension_numbers = #tpu.dot_dimension_numbers<[1], [0], [0], [1], [0, 0, 1, 1], [], []>} : vector<2x256xbf16>, vector<256x768xbf16>, vector<2x768xf32> -> vector<2x768xf32>
    %c0_48 = arith.constant 0 : index
    %c0_49 = arith.constant 0 : index
    %88 = vector.load %arg15[%c0_48, %c0_49] : memref<1x768xf32, #tpu.memory_space<vmem>>, vector<1x768xf32>
    %89 = vector.broadcast %88 : vector<1x768xf32> to vector<2x768xf32>
    %90 = arith.addf %87, %89 : vector<2x768xf32>
    %91 = arith.truncf %84 : vector<2x256xf32> to vector<2x256xbf16>
    %c0_50 = arith.constant 0 : index
    %c0_51 = arith.constant 0 : index
    %92 = vector.load %arg16[%c0_50, %c0_51] : memref<256x768xbf16, #tpu.memory_space<vmem>>, vector<256x768xbf16>
    %cst_52 = arith.constant dense<0.000000e+00> : vector<2x768xf32>
    %93 = tpu.matmul %91, %92, %cst_52 {dimension_numbers = #tpu.dot_dimension_numbers<[1], [0], [0], [1], [0, 0, 1, 1], [], []>} : vector<2x256xbf16>, vector<256x768xbf16>, vector<2x768xf32> -> vector<2x768xf32>
    %c0_53 = arith.constant 0 : index
    %c0_54 = arith.constant 0 : index
    %94 = vector.load %arg17[%c0_53, %c0_54] : memref<1x768xf32, #tpu.memory_space<vmem>>, vector<1x768xf32>
    %95 = vector.broadcast %94 : vector<1x768xf32> to vector<2x768xf32>
    %96 = arith.addf %93, %95 : vector<2x768xf32>
    %97 = vector.extract_strided_slice %90 {offsets = [0, 0], sizes = [2, 256], strides = [1, 1]} : vector<2x768xf32> to vector<2x256xf32>
    %98 = vector.extract_strided_slice %96 {offsets = [0, 0], sizes = [2, 256], strides = [1, 1]} : vector<2x768xf32> to vector<2x256xf32>
    %99 = arith.addf %97, %98 : vector<2x256xf32>
    %100 = arith.negf %99 : vector<2x256xf32>
    %101 = math.exp %100 : vector<2x256xf32>
    %cst_55 = arith.constant 1.000000e+00 : f32
    %102 = vector.broadcast %cst_55 : f32 to vector<2x256xf32>
    %103 = arith.addf %102, %101 : vector<2x256xf32>
    %104 = arith.divf %102, %103 : vector<2x256xf32>
    %105 = vector.extract_strided_slice %90 {offsets = [0, 256], sizes = [2, 256], strides = [1, 1]} : vector<2x768xf32> to vector<2x256xf32>
    %106 = vector.extract_strided_slice %96 {offsets = [0, 256], sizes = [2, 256], strides = [1, 1]} : vector<2x768xf32> to vector<2x256xf32>
    %107 = arith.addf %105, %106 : vector<2x256xf32>
    %108 = arith.negf %107 : vector<2x256xf32>
    %109 = math.exp %108 : vector<2x256xf32>
    %cst_56 = arith.constant 1.000000e+00 : f32
    %110 = vector.broadcast %cst_56 : f32 to vector<2x256xf32>
    %111 = arith.addf %110, %109 : vector<2x256xf32>
    %112 = arith.divf %110, %111 : vector<2x256xf32>
    %113 = vector.extract_strided_slice %90 {offsets = [0, 512], sizes = [2, 256], strides = [1, 1]} : vector<2x768xf32> to vector<2x256xf32>
    %114 = vector.extract_strided_slice %96 {offsets = [0, 512], sizes = [2, 256], strides = [1, 1]} : vector<2x768xf32> to vector<2x256xf32>
    %115 = arith.mulf %104, %114 : vector<2x256xf32>
    %116 = arith.addf %113, %115 : vector<2x256xf32>
    %117 = math.tanh %116 : vector<2x256xf32>
    %cst_57 = arith.constant 1.000000e+00 : f32
    %118 = vector.broadcast %cst_57 : f32 to vector<2x256xf32>
    %119 = arith.subf %118, %112 : vector<2x256xf32>
    %120 = arith.mulf %119, %117 : vector<2x256xf32>
    %121 = arith.mulf %112, %84 : vector<2x256xf32>
    %122 = arith.addf %120, %121 : vector<2x256xf32>
    %c0_58 = arith.constant 0 : index
    %c0_59 = arith.constant 0 : index
    %123 = vector.load %arg22[%c0_58, %c0_59] : memref<2x256xf32, #tpu.memory_space<vmem>>, vector<2x256xf32>
    tpu.vector_store %arg22[%c0_58, %c0_59], %122 {strides = array<i32>} : memref<2x256xf32, #tpu.memory_space<vmem>>, vector<2x256xf32>,
    %124 = arith.truncf %122 : vector<2x256xf32> to vector<2x256xbf16>
    %c0_60 = arith.constant 0 : index
    %c0_61 = arith.constant 0 : index
    %125 = vector.load %arg18[%c0_60, %c0_61] : memref<256x256xbf16, #tpu.memory_space<vmem>>, vector<256x256xbf16>
    %cst_62 = arith.constant dense<0.000000e+00> : vector<2x256xf32>
    %126 = tpu.matmul %124, %125, %cst_62 {dimension_numbers = #tpu.dot_dimension_numbers<[1], [0], [0], [1], [0, 0, 1, 1], [], []>} : vector<2x256xbf16>, vector<256x256xbf16>, vector<2x256xf32> -> vector<2x256xf32>
    %c0_63 = arith.constant 0 : index
    %c0_64 = arith.constant 0 : index
    %127 = vector.load %arg19[%c0_63, %c0_64] : memref<1x256xf32, #tpu.memory_space<vmem>>, vector<1x256xf32>
    %128 = vector.broadcast %127 : vector<1x256xf32> to vector<2x256xf32>
    %129 = arith.addf %126, %128 : vector<2x256xf32>
    %c0_65 = arith.constant 0 : index
    %c0_66 = arith.constant 0 : index
    %c0_67 = arith.constant 0 : index
    %130 = vector.load %arg21[%c0_65, %c0_66, %c0_67] : memref<1x2x256xf32, #tpu.memory_space<vmem>>, vector<1x2x256xf32>
    %131 = vector.shape_cast %130 : vector<1x2x256xf32> to vector<2x256xf32>
    %132 = vector.shape_cast %129 : vector<2x256xf32> to vector<1x2x256xf32>
    tpu.vector_store %arg21[%c0_65, %c0_66, %c0_67], %132 {strides = array<i32>} : memref<1x2x256xf32, #tpu.memory_space<vmem>>, vector<1x2x256xf32>,
    return
  }
  func.func @transform_0(%arg0: i32) -> (i32, i32, i32) {
    %c0_i32 = arith.constant 0 : i32
    %c0_i32_0 = arith.constant 0 : i32
    %c0_i32_1 = arith.constant 0 : i32
    return %arg0, %c0_i32, %c0_i32_0 : i32, i32, i32
  }
  func.func @transform_1(%arg0: i32) -> (i32, i32, i32) {
    %c0_i32 = arith.constant 0 : i32
    %c0_i32_0 = arith.constant 0 : i32
    %c0_i32_1 = arith.constant 0 : i32
    return %arg0, %c0_i32, %c0_i32_0 : i32, i32, i32
  }
  func.func @transform_2(%arg0: i32) -> (i32, i32, i32) {
    %c0_i32 = arith.constant 0 : i32
    %c0_i32_0 = arith.constant 0 : i32
    %c0_i32_1 = arith.constant 0 : i32
    return %arg0, %c0_i32, %c0_i32_0 : i32, i32, i32
  }
  func.func @transform_3(%arg0: i32) -> (i32, i32) {
    %c0_i32 = arith.constant 0 : i32
    %c0_i32_0 = arith.constant 0 : i32
    %c0_i32_1 = arith.constant 0 : i32
    return %c0_i32, %c0_i32_0 : i32, i32
  }
  func.func @transform_4(%arg0: i32) -> (i32, i32) {
    %c0_i32 = arith.constant 0 : i32
    %c0_i32_0 = arith.constant 0 : i32
    %c0_i32_1 = arith.constant 0 : i32
    return %c0_i32, %c0_i32_0 : i32, i32
  }
  func.func @transform_5(%arg0: i32) -> (i32, i32) {
    %c0_i32 = arith.constant 0 : i32
    %c0_i32_0 = arith.constant 0 : i32
    %c0_i32_1 = arith.constant 0 : i32
    return %c0_i32, %c0_i32_0 : i32, i32
  }
  func.func @transform_6(%arg0: i32) -> (i32, i32) {
    %c0_i32 = arith.constant 0 : i32
    %c0_i32_0 = arith.constant 0 : i32
    %c0_i32_1 = arith.constant 0 : i32
    return %c0_i32, %c0_i32_0 : i32, i32
  }
  func.func @transform_7(%arg0: i32) -> (i32, i32) {
    %c0_i32 = arith.constant 0 : i32
    %c0_i32_0 = arith.constant 0 : i32
    %c0_i32_1 = arith.constant 0 : i32
    return %c0_i32, %c0_i32_0 : i32, i32
  }
  func.func @transform_8(%arg0: i32) -> (i32, i32) {
    %c0_i32 = arith.constant 0 : i32
    %c0_i32_0 = arith.constant 0 : i32
    %c0_i32_1 = arith.constant 0 : i32
    return %c0_i32, %c0_i32_0 : i32, i32
  }
  func.func @transform_9(%arg0: i32) -> (i32, i32) {
    %c0_i32 = arith.constant 0 : i32
    %c0_i32_0 = arith.constant 0 : i32
    %c0_i32_1 = arith.constant 0 : i32
    return %c0_i32, %c0_i32_0 : i32, i32
  }
  func.func @transform_10(%arg0: i32) -> (i32, i32) {
    %c0_i32 = arith.constant 0 : i32
    %c0_i32_0 = arith.constant 0 : i32
    %c0_i32_1 = arith.constant 0 : i32
    return %c0_i32, %c0_i32_0 : i32, i32
  }
  func.func @transform_11(%arg0: i32) -> (i32, i32) {
    %c0_i32 = arith.constant 0 : i32
    %c0_i32_0 = arith.constant 0 : i32
    %c0_i32_1 = arith.constant 0 : i32
    return %c0_i32, %c0_i32_0 : i32, i32
  }
  func.func @transform_12(%arg0: i32) -> (i32, i32) {
    %c0_i32 = arith.constant 0 : i32
    %c0_i32_0 = arith.constant 0 : i32
    %c0_i32_1 = arith.constant 0 : i32
    return %c0_i32, %c0_i32_0 : i32, i32
  }
  func.func @transform_13(%arg0: i32) -> (i32, i32) {
    %c0_i32 = arith.constant 0 : i32
    %c0_i32_0 = arith.constant 0 : i32
    %c0_i32_1 = arith.constant 0 : i32
    return %c0_i32, %c0_i32_0 : i32, i32
  }
  func.func @transform_14(%arg0: i32) -> (i32, i32) {
    %c0_i32 = arith.constant 0 : i32
    %c0_i32_0 = arith.constant 0 : i32
    %c0_i32_1 = arith.constant 0 : i32
    return %c0_i32, %c0_i32_0 : i32, i32
  }
  func.func @transform_15(%arg0: i32) -> (i32, i32) {
    %c0_i32 = arith.constant 0 : i32
    %c0_i32_0 = arith.constant 0 : i32
    %c0_i32_1 = arith.constant 0 : i32
    return %c0_i32, %c0_i32_0 : i32, i32
  }
  func.func @transform_16(%arg0: i32) -> (i32, i32) {
    %c0_i32 = arith.constant 0 : i32
    %c0_i32_0 = arith.constant 0 : i32
    %c0_i32_1 = arith.constant 0 : i32
    return %c0_i32, %c0_i32_0 : i32, i32
  }
  func.func @transform_17(%arg0: i32) -> (i32, i32) {
    %c0_i32 = arith.constant 0 : i32
    %c0_i32_0 = arith.constant 0 : i32
    %c0_i32_1 = arith.constant 0 : i32
    return %c0_i32, %c0_i32_0 : i32, i32
  }
  func.func @transform_18(%arg0: i32) -> (i32, i32) {
    %c0_i32 = arith.constant 0 : i32
    %c0_i32_0 = arith.constant 0 : i32
    %c0_i32_1 = arith.constant 0 : i32
    return %c0_i32, %c0_i32_0 : i32, i32
  }
  func.func @transform_19(%arg0: i32) -> (i32, i32) {
    %c0_i32 = arith.constant 0 : i32
    %c0_i32_0 = arith.constant 0 : i32
    %c0_i32_1 = arith.constant 0 : i32
    return %c0_i32, %c0_i32_0 : i32, i32
  }
  func.func @transform_20(%arg0: i32) -> (i32, i32, i32) {
    %c0_i32 = arith.constant 0 : i32
    %c0_i32_0 = arith.constant 0 : i32
    %c0_i32_1 = arith.constant 0 : i32
    return %arg0, %c0_i32, %c0_i32_0 : i32, i32, i32
  }
  func.func @transform_21(%arg0: i32) -> (i32, i32) {
    %c0_i32 = arith.constant 0 : i32
    %c0_i32_0 = arith.constant 0 : i32
    %c0_i32_1 = arith.constant 0 : i32
    return %c0_i32, %c0_i32_0 : i32, i32
  }
}

</mosaic_0001>

<llo_original>
// kernel: _step_impl.1
$region0: #{_step_impl.1}
  #allocation0 [shape = 'u32[]', space=smem, size = 0x4, offset = 0x4, fixed_abs, tag = 'smem constant byte address 0x4 - core index']
  #allocation1 [shape = 'u32[144,128]{1,0:T(1,128)}', space=vmem, size = 0x12000, scoped, tag = 'internal scratch']
  %s0 = inlined_call_operand.vmem [shape: f32[1,2,16], index: 0, kind: input, shape index: {}]
  %s1 = inlined_call_operand.vmem [shape: f32[1,2,8], index: 1, kind: input, shape index: {}]
  %s2 = inlined_call_operand.vmem [shape: f32[1,2,8], index: 2, kind: input, shape index: {}]
  %s3 = inlined_call_operand.vmem [shape: f32[1,16], index: 3, kind: input, shape index: {}]
  %s4 = inlined_call_operand.hbm [shape: f32[1,8], index: 4, kind: input, shape index: {}]
  %s5 = inlined_call_operand.hbm [shape: f32[1,8], index: 5, kind: input, shape index: {}]
  %s6 = inlined_call_operand.vmem [shape: f32[1,16], index: 6, kind: input, shape index: {}]
  %s7 = inlined_call_operand.vmem [shape: f32[1,8], index: 7, kind: input, shape index: {}]
  %s8 = inlined_call_operand.vmem [shape: f32[1,8], index: 8, kind: input, shape index: {}]
  %s9 = inlined_call_operand.vmem [shape: bf16[16,256], index: 9, kind: input, shape index: {}]
  %s10 = inlined_call_operand.vmem [shape: bf16[8,256], index: 10, kind: input, shape index: {}]
  %s11 = inlined_call_operand.hbm [shape: bf16[8,256], index: 11, kind: input, shape index: {}]
  %s12 = inlined_call_operand.vmem [shape: f32[1,256], index: 12, kind: input, shape index: {}]
  %s13 = inlined_call_operand.hbm [shape: bf16[256,768], index: 13, kind: input, shape index: {}]
  %s14 = inlined_call_operand.vmem [shape: f32[1,768], index: 14, kind: input, shape index: {}]
  %s15 = inlined_call_operand.hbm [shape: bf16[256,768], index: 15, kind: input, shape index: {}]
  %s16 = inlined_call_operand.vmem [shape: f32[1,768], index: 16, kind: input, shape index: {}]
  %s17 = inlined_call_operand.hbm [shape: bf16[256,256], index: 17, kind: input, shape index: {}]
  %s18 = inlined_call_operand.vmem [shape: f32[1,256], index: 18, kind: input, shape index: {}]
  %s19 = inlined_call_operand.vmem [shape: f32[2,256], index: 19, kind: input, shape index: {}, may-alias: {19,21}]
  %s20 = inlined_call_operand.vmem [shape: f32[1,2,256], index: 20, kind: output, shape index: {0}]
  %s21 = inlined_call_operand.vmem [shape: f32[2,256], index: 21, kind: output, shape index: {1}, may-alias: {19,21}]
  %22 = xla_tuple %s20, %s21
  %s23 = sld [smem:[#allocation0]]
  $region126: #{_step_impl.1} parent=0
    _
  %s25 = ssub.s32 1, %s23
  %s26 = scalar_select 0, %s25, %s23
  $region1: #{_step_impl.1} parent=0
    #allocation2 [shape = 'u8[512]{0}', space=vmem, size = 0x400, scoped, tag = 'input window, operand 4, single buffered']
    #allocation3 [shape = 's32[1]{0}', space=sflag, size = 0x4, scoped, tag = 'scoped memory for _step_impl.1']
    #allocation4 [shape = 'u8[512]{0}', space=vmem, size = 0x400, scoped, tag = 'input window, operand 5, single buffered']
    #allocation5 [shape = 's32[1]{0}', space=sflag, size = 0x4, scoped, tag = 'scoped memory for _step_impl.1']
    #allocation6 [shape = 'u8[4096]{0}', space=vmem, size = 0x1000, scoped, tag = 'input window, operand 11, single buffered']
    #allocation7 [shape = 'u8[393216]{0}', space=vmem, size = 0x60000, scoped, tag = 'input window, operand 13, single buffered']
    #allocation8 [shape = 's32[1]{0}', space=sflag, size = 0x4, scoped, tag = 'scoped memory for _step_impl.1']
    #allocation9 [shape = 'u8[393216]{0}', space=vmem, size = 0x60000, scoped, tag = 'input window, operand 15, single buffered']
    #allocation10 [shape = 'u8[131072]{0}', space=vmem, size = 0x20000, scoped, tag = 'input window, operand 17, single buffered']
    #allocation11 [shape = 's32[1]{0}', space=sflag, size = 0x4, scoped, tag = 'scoped memory for _step_impl.1']
    %27 = vsyncpa [#allocation3], 0
    %28 = vsyncpa [#allocation5], 0
    %29 = vsyncpa [#allocation8], 0
    %30 = vsyncpa [#allocation11], 0
    // Predicated region
    $region2: #{_step_impl.1} parent=1 // pred_check
      _
    $region3: #{_step_impl.1} parent=1 // pred_check_branch
      %32 = sbr.rel (0) target = $region5
    $region4: #{_step_impl.1} parent=1 // pred_region
      _
    $region5: #{_step_impl.1} parent=1 // pred_fallthru
      _
    // Predicated region
    $region6: #{_step_impl.1} parent=1 // pred_check
      _
    $region7: #{_step_impl.1} parent=1 // pred_check_branch
      %34 = sbr.rel (0) target = $region9
    $region8: #{_step_impl.1} parent=1 // pred_region
      _
    $region9: #{_step_impl.1} parent=1 // pred_fallthru
      _
    // Predicated region
    $region10: #{_step_impl.1} parent=1 // pred_check
      _
    $region11: #{_step_impl.1} parent=1 // pred_check_branch
      %36 = sbr.rel (0) target = $region13
    $region12: #{_step_impl.1} parent=1 // pred_region
      _
    $region13: #{_step_impl.1} parent=1 // pred_fallthru
      _
    // Predicated region
    $region14: #{_step_impl.1} parent=1 // pred_check
      _
    $region15: #{_step_impl.1} parent=1 // pred_check_branch
      %38 = sbr.rel (0) target = $region17
    $region16: #{_step_impl.1} parent=1 // pred_region
      _
    $region17: #{_step_impl.1} parent=1 // pred_fallthru
      _
    // Predicated region
    $region18: #{_step_impl.1} parent=1 // pred_check
      _
    $region19: #{_step_impl.1} parent=1 // pred_check_branch
      %40 = sbr.rel (0) target = $region21
    $region20: #{_step_impl.1} parent=1 // pred_region
      %s42 = ssub.s32 16, 16
      %43 = vsyncadd [#allocation3], %s42
      %s45 = sshll.u32 [#allocation2], 4
      %s46 = int_to_ptr.vmem [resolvable:$true] %s45
      %48 = dma.hbm_to_vmem [thread:$0]  %s4, 16, %s46, [#allocation3]
    $region21: #{_step_impl.1} parent=1 // pred_fallthru
      _
    // Predicated region
    $region22: #{_step_impl.1} parent=1 // pred_check
      _
    $region23: #{_step_impl.1} parent=1 // pred_check_branch
      %50 = sbr.rel (0) target = $region25
    $region24: #{_step_impl.1} parent=1 // pred_region
      %s52 = ssub.s32 16, 16
      %53 = vsyncadd [#allocation5], %s52
      %s55 = sshll.u32 [#allocation4], 4
      %s56 = int_to_ptr.vmem [resolvable:$true] %s55
      %58 = dma.hbm_to_vmem [thread:$0]  %s5, 16, %s56, [#allocation5]
    $region25: #{_step_impl.1} parent=1 // pred_fallthru
      _
    // Predicated region
    $region26: #{_step_impl.1} parent=1 // pred_check
      _
    $region27: #{_step_impl.1} parent=1 // pred_check_branch
      %60 = sbr.rel (0) target = $region29
    $region28: #{_step_impl.1} parent=1 // pred_region
      _
    $region29: #{_step_impl.1} parent=1 // pred_fallthru
      _
    // Predicated region
    $region30: #{_step_impl.1} parent=1 // pred_check
      _
    $region31: #{_step_impl.1} parent=1 // pred_check_branch
      %62 = sbr.rel (0) target = $region33
    $region32: #{_step_impl.1} parent=1 // pred_region
      _
    $region33: #{_step_impl.1} parent=1 // pred_fallthru
      _
    // Predicated region
    $region34: #{_step_impl.1} parent=1 // pred_check
      _
    $region35: #{_step_impl.1} parent=1 // pred_check_branch
      %64 = sbr.rel (0) target = $region37
    $region36: #{_step_impl.1} parent=1 // pred_region
      _
    $region37: #{_step_impl.1} parent=1 // pred_fallthru
      _
    // Predicated region
    $region38: #{_step_impl.1} parent=1 // pred_check
      _
    $region39: #{_step_impl.1} parent=1 // pred_check_branch
      %66 = sbr.rel (0) target = $region41
    $region40: #{_step_impl.1} parent=1 // pred_region
      _
    $region41: #{_step_impl.1} parent=1 // pred_fallthru
      _
    // Predicated region
    $region42: #{_step_impl.1} parent=1 // pred_check
      _
    $region43: #{_step_impl.1} parent=1 // pred_check_branch
      %68 = sbr.rel (0) target = $region45
    $region44: #{_step_impl.1} parent=1 // pred_region
      _
    $region45: #{_step_impl.1} parent=1 // pred_fallthru
      _
    // Predicated region
    $region46: #{_step_impl.1} parent=1 // pred_check
      _
    $region47: #{_step_impl.1} parent=1 // pred_check_branch
      %70 = sbr.rel (0) target = $region49
    $region48: #{_step_impl.1} parent=1 // pred_region
      %s72 = ssub.s32 128, 128
      %73 = vsyncadd [#allocation5], %s72
      %s75 = sshll.u32 [#allocation6], 4
      %s76 = int_to_ptr.vmem [resolvable:$true] %s75
      %78 = dma.hbm_to_vmem [thread:$0]  %s11, 128, %s76, [#allocation5]
    $region49: #{_step_impl.1} parent=1 // pred_fallthru
      _
    // Predicated region
    $region50: #{_step_impl.1} parent=1 // pred_check
      _
    $region51: #{_step_impl.1} parent=1 // pred_check_branch
      %80 = sbr.rel (0) target = $region53
    $region52: #{_step_impl.1} parent=1 // pred_region
      _
    $region53: #{_step_impl.1} parent=1 // pred_fallthru
      _
    // Predicated region
    $region54: #{_step_impl.1} parent=1 // pred_check
      _
    $region55: #{_step_impl.1} parent=1 // pred_check_branch
      %82 = sbr.rel (0) target = $region57
    $region56: #{_step_impl.1} parent=1 // pred_region
      %s84 = ssub.s32 12288, 12288
      %85 = vsyncadd [#allocation8], %s84
      %s86 = sshll.u32 [#allocation7], 4
      %s87 = int_to_ptr.vmem [resolvable:$true] %s86
      %92 = dma.hbm_to_vmem [thread:$0]  %s13, 12288, %s87, [#allocation8], 384, 384, 24
    $region57: #{_step_impl.1} parent=1 // pred_fallthru
      _
    // Predicated region
    $region58: #{_step_impl.1} parent=1 // pred_check
      _
    $region59: #{_step_impl.1} parent=1 // pred_check_branch
      %94 = sbr.rel (0) target = $region61
    $region60: #{_step_impl.1} parent=1 // pred_region
      _
    $region61: #{_step_impl.1} parent=1 // pred_fallthru
      _
    // Predicated region
    $region62: #{_step_impl.1} parent=1 // pred_check
      _
    $region63: #{_step_impl.1} parent=1 // pred_check_branch
      %96 = sbr.rel (0) target = $region65
    $region64: #{_step_impl.1} parent=1 // pred_region
      %s98 = ssub.s32 12288, 12288
      %99 = vsyncadd [#allocation8], %s98
      %s100 = sshll.u32 [#allocation9], 4
      %s101 = int_to_ptr.vmem [resolvable:$true] %s100
      %106 = dma.hbm_to_vmem [thread:$0]  %s15, 12288, %s101, [#allocation8], 384, 384, 24
    $region65: #{_step_impl.1} parent=1 // pred_fallthru
      _
    // Predicated region
    $region66: #{_step_impl.1} parent=1 // pred_check
      _
    $region67: #{_step_impl.1} parent=1 // pred_check_branch
      %108 = sbr.rel (0) target = $region69
    $region68: #{_step_impl.1} parent=1 // pred_region
      _
    $region69: #{_step_impl.1} parent=1 // pred_fallthru
      _
    // Predicated region
    $region70: #{_step_impl.1} parent=1 // pred_check
      _
    $region71: #{_step_impl.1} parent=1 // pred_check_branch
      %110 = sbr.rel (0) target = $region73
    $region72: #{_step_impl.1} parent=1 // pred_region
      %s112 = ssub.s32 4096, 4096
      %113 = vsyncadd [#allocation11], %s112
      %s114 = sshll.u32 [#allocation10], 4
      %s115 = int_to_ptr.vmem [resolvable:$true] %s114
      %120 = dma.hbm_to_vmem [thread:$0]  %s17, 4096, %s115, [#allocation11], 128, 128, 8
    $region73: #{_step_impl.1} parent=1 // pred_fallthru
      _
    // Predicated region
    $region74: #{_step_impl.1} parent=1 // pred_check
      _
    $region75: #{_step_impl.1} parent=1 // pred_check_branch
      %122 = sbr.rel (0) target = $region77
    $region76: #{_step_impl.1} parent=1 // pred_region
      _
    $region77: #{_step_impl.1} parent=1 // pred_fallthru
      _
    // Predicated region
    $region78: #{_step_impl.1} parent=1 // pred_check
      _
    $region79: #{_step_impl.1} parent=1 // pred_check_branch
      %124 = sbr.rel (0) target = $region81
    $region80: #{_step_impl.1} parent=1 // pred_region
      _
    $region81: #{_step_impl.1} parent=1 // pred_fallthru
      _
    // Predicated region
    $region82: #{_step_impl.1} parent=1 // pred_check
      _
    $region83: #{_step_impl.1} parent=1 // pred_check_branch
      %126 = sbr.rel (0) target = $region85
    $region84: #{_step_impl.1} parent=1 // pred_region
      %127 = dma.done [#allocation3], 16
    $region85: #{_step_impl.1} parent=1 // pred_fallthru
      _
    // Predicated region
    $region86: #{_step_impl.1} parent=1 // pred_check
      _
    $region87: #{_step_impl.1} parent=1 // pred_check_branch
      %129 = sbr.rel (0) target = $region89
    $region88: #{_step_impl.1} parent=1 // pred_region
      %130 = dma.done [#allocation5], 16
    $region89: #{_step_impl.1} parent=1 // pred_fallthru
      _
    // Predicated region
    $region90: #{_step_impl.1} parent=1 // pred_check
      _
    $region91: #{_step_impl.1} parent=1 // pred_check_branch
      %132 = sbr.rel (0) target = $region93
    $region92: #{_step_impl.1} parent=1 // pred_region
      %133 = dma.done [#allocation5], 128
    $region93: #{_step_impl.1} parent=1 // pred_fallthru
      _
    // Predicated region
    $region94: #{_step_impl.1} parent=1 // pred_check
      _
    $region95: #{_step_impl.1} parent=1 // pred_check_branch
      %135 = sbr.rel (0) target = $region97
    $region96: #{_step_impl.1} parent=1 // pred_region
      %136 = dma.done [#allocation8], 12288
    $region97: #{_step_impl.1} parent=1 // pred_fallthru
      _
    // Predicated region
    $region98: #{_step_impl.1} parent=1 // pred_check
      _
    $region99: #{_step_impl.1} parent=1 // pred_check_branch
      %138 = sbr.rel (0) target = $region101
    $region100: #{_step_impl.1} parent=1 // pred_region
      %139 = dma.done [#allocation8], 12288
    $region101: #{_step_impl.1} parent=1 // pred_fallthru
      _
    // Predicated region
    $region102: #{_step_impl.1} parent=1 // pred_check
      _
    $region103: #{_step_impl.1} parent=1 // pred_check_branch
      %141 = sbr.rel (0) target = $region105
    $region104: #{_step_impl.1} parent=1 // pred_region
      %142 = dma.done [#allocation11], 4096
    $region105: #{_step_impl.1} parent=1 // pred_fallthru
      _
    %p144 = scmp.eq.s32.totalorder 0, 0
    // Predicated region
    $region106: #{_step_impl.1} parent=1 // pred_check
      %p145 = pneg %p144
    $region107: #{_step_impl.1} parent=1 // pred_check_branch
      %147 = sbr.rel (%p145) target = $region109
    $region108: #{_step_impl.1} parent=1 // pred_region
      %v148 = vld [vmem:[%s19] sm:$0xf]
      %149 = vst [vmem:[%s21] sm:$0xf] %v148
    $region109: #{_step_impl.1} parent=1 // pred_fallthru
      _
    %v150 = vld [vmem:[%s0] sm:$0x3]
    %v151 = vld [vmem:[%s1] sm:$0x3]
    %vm152 = vcmask 123904
    %v153 = vsel %vm152, %v150, 0.0
    %154 = vadd.xlane.f32.xlu0 %v153
    %v155 = vpop.xlane.xlu0 %154
    %vm156 = vcmask 58368
    %v157 = vsel %vm156, %v151, 0.0
    %158 = vadd.xlane.f32.xlu0 %v157
    %v159 = vpop.xlane.xlu0 %158
    %v160 = vadd.f32 %v155, %v159
    %v161 = vmul.f32 %v160, 0.041666668
    %v162 = vsub.f32 %v150, %v161
    %v163 = vsub.f32 %v151, %v161
    %v164 = vmul.f32 %v162, %v162
    %v165 = vsel %vm152, %v164, 0.0
    %166 = vadd.xlane.f32.xlu0 %v165
    %v167 = vpop.xlane.xlu0 %166
    %v168 = vmul.f32 %v163, %v163
    %v169 = vsel %vm156, %v168, 0.0
    %170 = vadd.xlane.f32.xlu0 %v169
    %v171 = vpop.xlane.xlu0 %170
    %v172 = vadd.f32 %v167, %v171
    %v173 = vmul.f32 %v172, 0.041666668
    %v174 = vadd.f32 %v173, 1e-05
    %v175 = vrsqrt.pop %v174
    %v176 = vmul.f32 %v162, %v175
    %v177 = vld [vmem:[%s3] sm:$0x1]
    %v179 = vlaneseq
    %v180 = vshrl.u32 %v179, 7
    %v181 = vsub.s32 0, %v180
    %v182 = vrot.slane %v177, %v181
    %v184 = vmul.f32 %v176, %v182
    %v185 = vld [vmem:[%s6] sm:$0x1]
    %v187 = vlaneseq
    %v188 = vshrl.u32 %v187, 7
    %v189 = vsub.s32 0, %v188
    %v190 = vrot.slane %v185, %v189
    %v192 = vadd.f32 %v184, %v190
    %v193 = vpack.c.bf16 %v192, %v192
    %v194 = vld [vmem:[%s9] sm:$0xff]
    %v195 = vld [vmem:[%s9 + $0x8] sm:$0xff]
    %v196 = vmul.f32 %v163, %v175
    %v197 = vld [vmem:[#allocation2] sm:$0x1]
    %v199 = vlaneseq
    %v200 = vshrl.u32 %v199, 7
    %v201 = vsub.s32 0, %v200
    %v202 = vrot.slane %v197, %v201
    %v204 = vmul.f32 %v196, %v202
    %v205 = vld [vmem:[%s7] sm:$0x1]
    %v207 = vlaneseq
    %v208 = vshrl.u32 %v207, 7
    %v209 = vsub.s32 0, %v208
    %v210 = vrot.slane %v205, %v209
    %v212 = vadd.f32 %v204, %v210
    %v213 = vpack.c.bf16 %v212, %v212
    %v214 = vld [vmem:[%s10] sm:$0xff]
    %v216 = vunpack.c.l.b16 %v214
    %v217 = vunpack.c.h.b16 %v214
    %v218 = vpack.c.b16 %v216, %v216
    %v219 = vpack.c.b16 %v217, %v217
    %vm220 = vcmask 64512
    %v222 = vsel %vm220, %v213, 0
    %vm224 = vcmask 1043456
    %v226 = vsel %vm224, %v218, 0
    %v229 = vsel %vm224, %v219, 0
    %231 = vmatprep.subr.bf16.mxu0 %v229
    %232 = vmatpush1.bf16.msra.mxu0 %v226
    %233 = vmatprep.subr.bf16.mxu0 0
    %234 = vmatpush1.bf16.msra.mxu0 0
    %235 = vmatprep.subr.bf16.mxu0 0
    %236 = vmatpush1.bf16.msra.mxu0 0
    %237 = vmatprep.subr.bf16.mxu0 0
    %238 = vmatpush1.bf16.msra.mxu0 0
    %239 = vmatprep.subr.bf16.mxu0 0
    %240 = vmatpush1.bf16.msra.mxu0 0
    %241 = vmatprep.subr.bf16.mxu0 0
    %242 = vmatpush1.bf16.msra.mxu0 0
    %243 = vmatprep.subr.bf16.mxu0 0
    %244 = vmatpush1.bf16.msra.mxu0 0
    %245 = vmatprep.subr.bf16.mxu0 0
    %246 = vmatpush1.bf16.msra.mxu0 0
    %247 = vmatprep.subr.bf16.mxu0 0
    %248 = vmatpush1.bf16.msra.mxu0 0
    %249 = vmatprep.subr.bf16.mxu0 0
    %250 = vmatpush1.bf16.msra.mxu0 0
    %251 = vmatprep.subr.bf16.mxu0 0
    %252 = vmatpush1.bf16.msra.mxu0 0
    %253 = vmatprep.subr.bf16.mxu0 0
    %254 = vmatpush1.bf16.msra.mxu0 0
    %255 = vmatprep.subr.bf16.mxu0 0
    %256 = vmatpush1.bf16.msra.mxu0 0
    %257 = vmatprep.subr.bf16.mxu0 0
    %258 = vmatpush1.bf16.msra.mxu0 0
    %259 = vmatprep.subr.bf16.mxu0 0
    %260 = vmatpush1.bf16.msra.mxu0 0
    %261 = vmatprep.subr.bf16.mxu0 0
    %262 = vmatpush1.bf16.msra.mxu0 0
    %263 = vmatprep.mubr.bf16.mxu0 0
    %264 = vmatmul.mubr.bf16.gmra.mrb[0].mxu0 %v222
    %v265 = vpop.f32.mrb[0].mxu0
    %v266 = vadd.f32 0.0, %v265
    %v267 = vpop.f32.mrb[0].mxu0
    %v268 = vadd.f32 0.0, %v267
    %v269 = vpop.f32.mrb[0].mxu0
    %v270 = vpop.f32.mrb[0].mxu0
    %271 = vdwg.mxu0
    %v274 = vunpack.c.l.b16 %v194
    %v275 = vunpack.c.h.b16 %v194
    %v276 = vunpack.c.l.b16 %v195
    %v277 = vunpack.c.h.b16 %v195
    %v278 = vpack.c.b16 %v276, %v274
    %v279 = vpack.c.b16 %v277, %v275
    %vm282 = vcmask 130048
    %v284 = vsel %vm282, %v193, 0
    %286 = vmatprep.subr.bf16.mxu0 %v279
    %287 = vmatpush1.bf16.msra.mxu0 %v278
    %288 = vmatprep.subr.bf16.mxu0 0
    %289 = vmatpush1.bf16.msra.mxu0 0
    %290 = vmatprep.subr.bf16.mxu0 0
    %291 = vmatpush1.bf16.msra.mxu0 0
    %292 = vmatprep.subr.bf16.mxu0 0
    %293 = vmatpush1.bf16.msra.mxu0 0
    %294 = vmatprep.subr.bf16.mxu0 0
    %295 = vmatpush1.bf16.msra.mxu0 0
    %296 = vmatprep.subr.bf16.mxu0 0
    %297 = vmatpush1.bf16.msra.mxu0 0
    %298 = vmatprep.subr.bf16.mxu0 0
    %299 = vmatpush1.bf16.msra.mxu0 0
    %300 = vmatprep.subr.bf16.mxu0 0
    %301 = vmatpush1.bf16.msra.mxu0 0
    %302 = vmatprep.subr.bf16.mxu0 0
    %303 = vmatpush1.bf16.msra.mxu0 0
    %304 = vmatprep.subr.bf16.mxu0 0
    %305 = vmatpush1.bf16.msra.mxu0 0
    %306 = vmatprep.subr.bf16.mxu0 0
    %307 = vmatpush1.bf16.msra.mxu0 0
    %308 = vmatprep.subr.bf16.mxu0 0
    %309 = vmatpush1.bf16.msra.mxu0 0
    %310 = vmatprep.subr.bf16.mxu0 0
    %311 = vmatpush1.bf16.msra.mxu0 0
    %312 = vmatprep.subr.bf16.mxu0 0
    %313 = vmatpush1.bf16.msra.mxu0 0
    %314 = vmatprep.subr.bf16.mxu0 0
    %315 = vmatpush1.bf16.msra.mxu0 0
    %316 = vmatprep.subr.bf16.mxu0 0
    %317 = vmatpush1.bf16.msra.mxu0 0
    %318 = vmatprep.mubr.bf16.mxu0 0
    %319 = vmatmul.mubr.bf16.gmra.mrb[0].mxu0 %v284
    %v320 = vpop.f32.mrb[0].mxu0
    %v321 = vadd.f32 %v266, %v320
    %v322 = vpop.f32.mrb[0].mxu0
    %v323 = vadd.f32 %v268, %v322
    %v324 = vpop.f32.mrb[0].mxu0
    %v325 = vpop.f32.mrb[0].mxu0
    %326 = vdwg.mxu0
    %v327 = vld [vmem:[%s2] sm:$0x3]
    %v328 = vsel %vm156, %v327, 0.0
    %329 = vadd.xlane.f32.xlu0 %v328
    %v330 = vpop.xlane.xlu0 %329
    %v331 = vmul.f32 %v330, 0.125
    %v332 = vsub.f32 %v327, %v331
    %v333 = vmul.f32 %v332, %v332
    %v334 = vsel %vm156, %v333, 0.0
    %335 = vadd.xlane.f32.xlu0 %v334
    %v336 = vpop.xlane.xlu0 %335
    %v337 = vmul.f32 %v336, 0.125
    %v338 = vadd.f32 %v337, 1e-05
    %v339 = vrsqrt.pop %v338
    %v340 = vmul.f32 %v332, %v339
    %v341 = vld [vmem:[#allocation4] sm:$0x1]
    %v343 = vlaneseq
    %v344 = vshrl.u32 %v343, 7
    %v345 = vsub.s32 0, %v344
    %v346 = vrot.slane %v341, %v345
    %v348 = vmul.f32 %v340, %v346
    %v349 = vld [vmem:[%s8] sm:$0x1]
    %v351 = vlaneseq
    %v352 = vshrl.u32 %v351, 7
    %v353 = vsub.s32 0, %v352
    %v354 = vrot.slane %v349, %v353
    %v356 = vadd.f32 %v348, %v354
    %v357 = vpack.c.bf16 %v356, %v356
    %v358 = vld [vmem:[#allocation6] sm:$0xff]
    %v360 = vunpack.c.l.b16 %v358
    %v361 = vunpack.c.h.b16 %v358
    %v362 = vpack.c.b16 %v360, %v360
    %v363 = vpack.c.b16 %v361, %v361
    %v365 = vsel %vm220, %v357, 0
    %v368 = vsel %vm224, %v362, 0
    %v371 = vsel %vm224, %v363, 0
    %373 = vmatprep.subr.bf16.mxu0 %v371
    %374 = vmatpush1.bf16.msra.mxu0 %v368
    %375 = vmatprep.subr.bf16.mxu0 0
    %376 = vmatpush1.bf16.msra.mxu0 0
    %377 = vmatprep.subr.bf16.mxu0 0
    %378 = vmatpush1.bf16.msra.mxu0 0
    %379 = vmatprep.subr.bf16.mxu0 0
    %380 = vmatpush1.bf16.msra.mxu0 0
    %381 = vmatprep.subr.bf16.mxu0 0
    %382 = vmatpush1.bf16.msra.mxu0 0
    %383 = vmatprep.subr.bf16.mxu0 0
    %384 = vmatpush1.bf16.msra.mxu0 0
    %385 = vmatprep.subr.bf16.mxu0 0
    %386 = vmatpush1.bf16.msra.mxu0 0
    %387 = vmatprep.subr.bf16.mxu0 0
    %388 = vmatpush1.bf16.msra.mxu0 0
    %389 = vmatprep.subr.bf16.mxu0 0
    %390 = vmatpush1.bf16.msra.mxu0 0
    %391 = vmatprep.subr.bf16.mxu0 0
    %392 = vmatpush1.bf16.msra.mxu0 0
    %393 = vmatprep.subr.bf16.mxu0 0
    %394 = vmatpush1.bf16.msra.mxu0 0
    %395 = vmatprep.subr.bf16.mxu0 0
    %396 = vmatpush1.bf16.msra.mxu0 0
    %397 = vmatprep.subr.bf16.mxu0 0
    %398 = vmatpush1.bf16.msra.mxu0 0
    %399 = vmatprep.subr.bf16.mxu0 0
    %400 = vmatpush1.bf16.msra.mxu0 0
    %401 = vmatprep.subr.bf16.mxu0 0
    %402 = vmatpush1.bf16.msra.mxu0 0
    %403 = vmatprep.subr.bf16.mxu0 0
    %404 = vmatpush1.bf16.msra.mxu0 0
    %405 = vmatprep.mubr.bf16.mxu0 0
    %406 = vmatmul.mubr.bf16.gmra.mrb[0].mxu0 %v365
    %v407 = vpop.f32.mrb[0].mxu0
    %v408 = vadd.f32 0.0, %v407
    %v409 = vpop.f32.mrb[0].mxu0
    %v410 = vadd.f32 0.0, %v409
    %v411 = vpop.f32.mrb[0].mxu0
    %v412 = vpop.f32.mrb[0].mxu0
    %413 = vdwg.mxu0
    %v414 = vadd.f32 %v321, %v408
    %v415 = vadd.f32 %v323, %v410
    %v416 = vld [vmem:[%s12] sm:$0x3]
    %v418 = vlaneseq
    %v419 = vshrl.u32 %v418, 7
    %v420 = vsub.s32 0, %v419
    %v421 = vrot.slane %v416, %v420
    %v422 = vlaneseq
    %v423 = vshrl.u32 %v422, 7
    %v424 = vsub.s32 1, %v423
    %v425 = vrot.slane %v416, %v424
    %v428 = vadd.f32 %v414, %v421
    %v429 = vadd.f32 %v415, %v425
    %v430 = vld [vmem:[%s21] sm:$0xf]
    %v431 = vpack.c.bf16 %v428, %v428
    %v432 = vpack.c.bf16 %v429, %v429
    %v433 = vld [vmem:[#allocation7] sm:$0xff]
    %v434 = vld [vmem:[#allocation7 + $0x8] sm:$0xff]
    %v435 = vld [vmem:[#allocation7 + $0x10] sm:$0xff]
    %v436 = vld [vmem:[#allocation7 + $0x18] sm:$0xff]
    %v437 = vld [vmem:[#allocation7 + $0x20] sm:$0xff]
    %v438 = vld [vmem:[#allocation7 + $0x28] sm:$0xff]
    %v439 = vld [vmem:[#allocation7 + $0x30] sm:$0xff]
    %v440 = vld [vmem:[#allocation7 + $0x38] sm:$0xff]
    %v441 = vld [vmem:[#allocation7 + $0x40] sm:$0xff]
    %v442 = vld [vmem:[#allocation7 + $0x48] sm:$0xff]
    %v443 = vld [vmem:[#allocation7 + $0x50] sm:$0xff]
    %v444 = vld [vmem:[#allocation7 + $0x58] sm:$0xff]
    %v445 = vld [vmem:[#allocation7 + $0x60] sm:$0xff]
    %v446 = vld [vmem:[#allocation7 + $0x68] sm:$0xff]
    %v447 = vld [vmem:[#allocation7 + $0x70] sm:$0xff]
    %v448 = vld [vmem:[#allocation7 + $0x78] sm:$0xff]
    %v449 = vld [vmem:[#allocation7 + $0x80] sm:$0xff]
    %v450 = vld [vmem:[#allocation7 + $0x88] sm:$0xff]
    %v451 = vld [vmem:[#allocation7 + $0x90] sm:$0xff]
    %v452 = vld [vmem:[#allocation7 + $0x98] sm:$0xff]
    %v453 = vld [vmem:[#allocation7 + $0xa0] sm:$0xff]
    %v454 = vld [vmem:[#allocation7 + $0xa8] sm:$0xff]
    %v455 = vld [vmem:[#allocation7 + $0xb0] sm:$0xff]
    %v456 = vld [vmem:[#allocation7 + $0xb8] sm:$0xff]
    %v457 = vld [vmem:[#allocation7 + $0xc0] sm:$0xff]
    %v458 = vld [vmem:[#allocation7 + $0xc8] sm:$0xff]
    %v459 = vld [vmem:[#allocation7 + $0xd0] sm:$0xff]
    %v460 = vld [vmem:[#allocation7 + $0xd8] sm:$0xff]
    %v461 = vld [vmem:[#allocation7 + $0xe0] sm:$0xff]
    %v462 = vld [vmem:[#allocation7 + $0xe8] sm:$0xff]
    %v463 = vld [vmem:[#allocation7 + $0xf0] sm:$0xff]
    %v464 = vld [vmem:[#allocation7 + $0xf8] sm:$0xff]
    %v465 = vld [vmem:[#allocation7 + $0x100] sm:$0xff]
    %v466 = vld [vmem:[#allocation7 + $0x108] sm:$0xff]
    %v467 = vld [vmem:[#allocation7 + $0x110] sm:$0xff]
    %v468 = vld [vmem:[#allocation7 + $0x118] sm:$0xff]
    %v469 = vld [vmem:[#allocation7 + $0x120] sm:$0xff]
    %v470 = vld [vmem:[#allocation7 + $0x128] sm:$0xff]
    %v471 = vld [vmem:[#allocation7 + $0x130] sm:$0xff]
    %v472 = vld [vmem:[#allocation7 + $0x138] sm:$0xff]
    %v473 = vld [vmem:[#allocation7 + $0x140] sm:$0xff]
    %v474 = vld [vmem:[#allocation7 + $0x148] sm:$0xff]
    %v475 = vld [vmem:[#allocation7 + $0x150] sm:$0xff]
    %v476 = vld [vmem:[#allocation7 + $0x158] sm:$0xff]
    %v477 = vld [vmem:[#allocation7 + $0x160] sm:$0xff]
    %v478 = vld [vmem:[#allocation7 + $0x168] sm:$0xff]
    %v479 = vld [vmem:[#allocation7 + $0x170] sm:$0xff]
    %v480 = vld [vmem:[#allocation7 + $0x178] sm:$0xff]
    %v481 = vld [vmem:[#allocation7 + $0x180] sm:$0xff]
    %v482 = vld [vmem:[#allocation7 + $0x188] sm:$0xff]
    %v483 = vld [vmem:[#allocation7 + $0x190] sm:$0xff]
    %v484 = vld [vmem:[#allocation7 + $0x198] sm:$0xff]
    %v485 = vld [vmem:[#allocation7 + $0x1a0] sm:$0xff]
    %v486 = vld [vmem:[#allocation7 + $0x1a8] sm:$0xff]
    %v487 = vld [vmem:[#allocation7 + $0x1b0] sm:$0xff]
    %v488 = vld [vmem:[#allocation7 + $0x1b8] sm:$0xff]
    %v489 = vld [vmem:[#allocation7 + $0x1c0] sm:$0xff]
    %v490 = vld [vmem:[#allocation7 + $0x1c8] sm:$0xff]
    %v491 = vld [vmem:[#allocation7 + $0x1d0] sm:$0xff]
    %v492 = vld [vmem:[#allocation7 + $0x1d8] sm:$0xff]
    %v493 = vld [vmem:[#allocation7 + $0x1e0] sm:$0xff]
    %v494 = vld [vmem:[#allocation7 + $0x1e8] sm:$0xff]
    %v495 = vld [vmem:[#allocation7 + $0x1f0] sm:$0xff]
    %v496 = vld [vmem:[#allocation7 + $0x1f8] sm:$0xff]
    %v497 = vld [vmem:[#allocation7 + $0x200] sm:$0xff]
    %v498 = vld [vmem:[#allocation7 + $0x208] sm:$0xff]
    %v499 = vld [vmem:[#allocation7 + $0x210] sm:$0xff]
    %v500 = vld [vmem:[#allocation7 + $0x218] sm:$0xff]
    %v501 = vld [vmem:[#allocation7 + $0x220] sm:$0xff]
    %v502 = vld [vmem:[#allocation7 + $0x228] sm:$0xff]
    %v503 = vld [vmem:[#allocation7 + $0x230] sm:$0xff]
    %v504 = vld [vmem:[#allocation7 + $0x238] sm:$0xff]
    %v505 = vld [vmem:[#allocation7 + $0x240] sm:$0xff]
    %v506 = vld [vmem:[#allocation7 + $0x248] sm:$0xff]
    %v507 = vld [vmem:[#allocation7 + $0x250] sm:$0xff]
    %v508 = vld [vmem:[#allocation7 + $0x258] sm:$0xff]
    %v509 = vld [vmem:[#allocation7 + $0x260] sm:$0xff]
    %v510 = vld [vmem:[#allocation7 + $0x268] sm:$0xff]
    %v511 = vld [vmem:[#allocation7 + $0x270] sm:$0xff]
    %v512 = vld [vmem:[#allocation7 + $0x278] sm:$0xff]
    %v513 = vld [vmem:[#allocation7 + $0x280] sm:$0xff]
    %v514 = vld [vmem:[#allocation7 + $0x288] sm:$0xff]
    %v515 = vld [vmem:[#allocation7 + $0x290] sm:$0xff]
    %v516 = vld [vmem:[#allocation7 + $0x298] sm:$0xff]
    %v517 = vld [vmem:[#allocation7 + $0x2a0] sm:$0xff]
    %v518 = vld [vmem:[#allocation7 + $0x2a8] sm:$0xff]
    %v519 = vld [vmem:[#allocation7 + $0x2b0] sm:$0xff]
    %v520 = vld [vmem:[#allocation7 + $0x2b8] sm:$0xff]
    %v521 = vld [vmem:[#allocation7 + $0x2c0] sm:$0xff]
    %v522 = vld [vmem:[#allocation7 + $0x2c8] sm:$0xff]
    %v523 = vld [vmem:[#allocation7 + $0x2d0] sm:$0xff]
    %v524 = vld [vmem:[#allocation7 + $0x2d8] sm:$0xff]
    %v525 = vld [vmem:[#allocation7 + $0x2e0] sm:$0xff]
    %v526 = vld [vmem:[#allocation7 + $0x2e8] sm:$0xff]
    %v527 = vld [vmem:[#allocation7 + $0x2f0] sm:$0xff]
    %v528 = vld [vmem:[#allocation7 + $0x2f8] sm:$0xff]
    %v529 = vld [vmem:[%s14] sm:$0x3f]
    %v531 = vlaneseq
    %v532 = vshrl.u32 %v531, 7
    %v533 = vsub.s32 0, %v532
    %v534 = vrot.slane %v529, %v533
    %v535 = vlaneseq
    %v536 = vshrl.u32 %v535, 7
    %v537 = vsub.s32 1, %v536
    %v538 = vrot.slane %v529, %v537
    %v539 = vlaneseq
    %v540 = vshrl.u32 %v539, 7
    %v541 = vsub.s32 2, %v540
    %v542 = vrot.slane %v529, %v541
    %v543 = vlaneseq
    %v544 = vshrl.u32 %v543, 7
    %v545 = vsub.s32 3, %v544
    %v546 = vrot.slane %v529, %v545
    %v547 = vlaneseq
    %v548 = vshrl.u32 %v547, 7
    %v549 = vsub.s32 4, %v548
    %v550 = vrot.slane %v529, %v549
    %v551 = vlaneseq
    %v552 = vshrl.u32 %v551, 7
    %v553 = vsub.s32 5, %v552
    %v554 = vrot.slane %v529, %v553
    %v657 = vunpack.c.l.b16 %v433
    %v658 = vunpack.c.h.b16 %v433
    %v659 = vunpack.c.l.b16 %v434
    %v660 = vunpack.c.h.b16 %v434
    %v661 = vunpack.c.l.b16 %v435
    %v662 = vunpack.c.h.b16 %v435
    %v663 = vunpack.c.l.b16 %v436
    %v664 = vunpack.c.h.b16 %v436
    %v665 = vunpack.c.l.b16 %v437
    %v666 = vunpack.c.h.b16 %v437
    %v667 = vunpack.c.l.b16 %v438
    %v668 = vunpack.c.h.b16 %v438
    %v669 = vunpack.c.l.b16 %v439
    %v670 = vunpack.c.h.b16 %v439
    %v671 = vunpack.c.l.b16 %v440
    %v672 = vunpack.c.h.b16 %v440
    %v673 = vunpack.c.l.b16 %v441
    %v674 = vunpack.c.h.b16 %v441
    %v675 = vunpack.c.l.b16 %v442
    %v676 = vunpack.c.h.b16 %v442
    %v677 = vunpack.c.l.b16 %v443
    %v678 = vunpack.c.h.b16 %v443
    %v679 = vunpack.c.l.b16 %v444
    %v680 = vunpack.c.h.b16 %v444
    %v681 = vunpack.c.l.b16 %v445
    %v682 = vunpack.c.h.b16 %v445
    %v683 = vunpack.c.l.b16 %v446
    %v684 = vunpack.c.h.b16 %v446
    %v685 = vunpack.c.l.b16 %v447
    %v686 = vunpack.c.h.b16 %v447
    %v687 = vunpack.c.l.b16 %v448
    %v688 = vunpack.c.h.b16 %v448
    %v689 = vunpack.c.l.b16 %v449
    %v690 = vunpack.c.h.b16 %v449
    %v691 = vunpack.c.l.b16 %v450
    %v692 = vunpack.c.h.b16 %v450
    %v693 = vunpack.c.l.b16 %v451
    %v694 = vunpack.c.h.b16 %v451
    %v695 = vunpack.c.l.b16 %v452
    %v696 = vunpack.c.h.b16 %v452
    %v697 = vunpack.c.l.b16 %v453
    %v698 = vunpack.c.h.b16 %v453
    %v699 = vunpack.c.l.b16 %v454
    %v700 = vunpack.c.h.b16 %v454
    %v701 = vunpack.c.l.b16 %v455
    %v702 = vunpack.c.h.b16 %v455
    %v703 = vunpack.c.l.b16 %v456
    %v704 = vunpack.c.h.b16 %v456
    %v705 = vunpack.c.l.b16 %v457
    %v706 = vunpack.c.h.b16 %v457
    %v707 = vunpack.c.l.b16 %v458
    %v708 = vunpack.c.h.b16 %v458
    %v709 = vunpack.c.l.b16 %v459
    %v710 = vunpack.c.h.b16 %v459
    %v711 = vunpack.c.l.b16 %v460
    %v712 = vunpack.c.h.b16 %v460
    %v713 = vunpack.c.l.b16 %v461
    %v714 = vunpack.c.h.b16 %v461
    %v715 = vunpack.c.l.b16 %v462
    %v716 = vunpack.c.h.b16 %v462
    %v717 = vunpack.c.l.b16 %v463
    %v718 = vunpack.c.h.b16 %v463
    %v719 = vunpack.c.l.b16 %v464
    %v720 = vunpack.c.h.b16 %v464
    %v721 = vunpack.c.l.b16 %v465
    %v722 = vunpack.c.h.b16 %v465
    %v723 = vunpack.c.l.b16 %v466
    %v724 = vunpack.c.h.b16 %v466
    %v725 = vunpack.c.l.b16 %v467
    %v726 = vunpack.c.h.b16 %v467
    %v727 = vunpack.c.l.b16 %v468
    %v728 = vunpack.c.h.b16 %v468
    %v729 = vunpack.c.l.b16 %v469
    %v730 = vunpack.c.h.b16 %v469
    %v731 = vunpack.c.l.b16 %v470
    %v732 = vunpack.c.h.b16 %v470
    %v733 = vunpack.c.l.b16 %v471
    %v734 = vunpack.c.h.b16 %v471
    %v735 = vunpack.c.l.b16 %v472
    %v736 = vunpack.c.h.b16 %v472
    %v737 = vunpack.c.l.b16 %v473
    %v738 = vunpack.c.h.b16 %v473
    %v739 = vunpack.c.l.b16 %v474
    %v740 = vunpack.c.h.b16 %v474
    %v741 = vunpack.c.l.b16 %v475
    %v742 = vunpack.c.h.b16 %v475
    %v743 = vunpack.c.l.b16 %v476
    %v744 = vunpack.c.h.b16 %v476
    %v745 = vunpack.c.l.b16 %v477
    %v746 = vunpack.c.h.b16 %v477
    %v747 = vunpack.c.l.b16 %v478
    %v748 = vunpack.c.h.b16 %v478
    %v749 = vunpack.c.l.b16 %v479
    %v750 = vunpack.c.h.b16 %v479
    %v751 = vunpack.c.l.b16 %v480
    %v752 = vunpack.c.h.b16 %v480
    %v753 = vunpack.c.l.b16 %v481
    %v754 = vunpack.c.h.b16 %v481
    %v755 = vunpack.c.l.b16 %v482
    %v756 = vunpack.c.h.b16 %v482
    %v757 = vunpack.c.l.b16 %v483
    %v758 = vunpack.c.h.b16 %v483
    %v759 = vunpack.c.l.b16 %v484
    %v760 = vunpack.c.h.b16 %v484
    %v761 = vunpack.c.l.b16 %v485
    %v762 = vunpack.c.h.b16 %v485
    %v763 = vunpack.c.l.b16 %v486
    %v764 = vunpack.c.h.b16 %v486
    %v765 = vunpack.c.l.b16 %v487
    %v766 = vunpack.c.h.b16 %v487
    %v767 = vunpack.c.l.b16 %v488
    %v768 = vunpack.c.h.b16 %v488
    %v769 = vunpack.c.l.b16 %v489
    %v770 = vunpack.c.h.b16 %v489
    %v771 = vunpack.c.l.b16 %v490
    %v772 = vunpack.c.h.b16 %v490
    %v773 = vunpack.c.l.b16 %v491
    %v774 = vunpack.c.h.b16 %v491
    %v775 = vunpack.c.l.b16 %v492
    %v776 = vunpack.c.h.b16 %v492
    %v777 = vunpack.c.l.b16 %v493
    %v778 = vunpack.c.h.b16 %v493
    %v779 = vunpack.c.l.b16 %v494
    %v780 = vunpack.c.h.b16 %v494
    %v781 = vunpack.c.l.b16 %v495
    %v782 = vunpack.c.h.b16 %v495
    %v783 = vunpack.c.l.b16 %v496
    %v784 = vunpack.c.h.b16 %v496
    %v785 = vunpack.c.l.b16 %v497
    %v786 = vunpack.c.h.b16 %v497
    %v787 = vunpack.c.l.b16 %v498
    %v788 = vunpack.c.h.b16 %v498
    %v789 = vunpack.c.l.b16 %v499
    %v790 = vunpack.c.h.b16 %v499
    %v791 = vunpack.c.l.b16 %v500
    %v792 = vunpack.c.h.b16 %v500
    %v793 = vunpack.c.l.b16 %v501
    %v794 = vunpack.c.h.b16 %v501
    %v795 = vunpack.c.l.b16 %v502
    %v796 = vunpack.c.h.b16 %v502
    %v797 = vunpack.c.l.b16 %v503
    %v798 = vunpack.c.h.b16 %v503
    %v799 = vunpack.c.l.b16 %v504
    %v800 = vunpack.c.h.b16 %v504
    %v801 = vunpack.c.l.b16 %v505
    %v802 = vunpack.c.h.b16 %v505
    %v803 = vunpack.c.l.b16 %v506
    %v804 = vunpack.c.h.b16 %v506
    %v805 = vunpack.c.l.b16 %v507
    %v806 = vunpack.c.h.b16 %v507
    %v807 = vunpack.c.l.b16 %v508
    %v808 = vunpack.c.h.b16 %v508
    %v809 = vunpack.c.l.b16 %v509
    %v810 = vunpack.c.h.b16 %v509
    %v811 = vunpack.c.l.b16 %v510
    %v812 = vunpack.c.h.b16 %v510
    %v813 = vunpack.c.l.b16 %v511
    %v814 = vunpack.c.h.b16 %v511
    %v815 = vunpack.c.l.b16 %v512
    %v816 = vunpack.c.h.b16 %v512
    %v817 = vunpack.c.l.b16 %v513
    %v818 = vunpack.c.h.b16 %v513
    %v819 = vunpack.c.l.b16 %v514
    %v820 = vunpack.c.h.b16 %v514
    %v821 = vunpack.c.l.b16 %v515
    %v822 = vunpack.c.h.b16 %v515
    %v823 = vunpack.c.l.b16 %v516
    %v824 = vunpack.c.h.b16 %v516
    %v825 = vunpack.c.l.b16 %v517
    %v826 = vunpack.c.h.b16 %v517
    %v827 = vunpack.c.l.b16 %v518
    %v828 = vunpack.c.h.b16 %v518
    %v829 = vunpack.c.l.b16 %v519
    %v830 = vunpack.c.h.b16 %v519
    %v831 = vunpack.c.l.b16 %v520
    %v832 = vunpack.c.h.b16 %v520
    %v833 = vunpack.c.l.b16 %v521
    %v834 = vunpack.c.h.b16 %v521
    %v835 = vunpack.c.l.b16 %v522
    %v836 = vunpack.c.h.b16 %v522
    %v837 = vunpack.c.l.b16 %v523
    %v838 = vunpack.c.h.b16 %v523
    %v839 = vunpack.c.l.b16 %v524
    %v840 = vunpack.c.h.b16 %v524
    %v841 = vunpack.c.l.b16 %v525
    %v842 = vunpack.c.h.b16 %v525
    %v843 = vunpack.c.l.b16 %v526
    %v844 = vunpack.c.h.b16 %v526
    %v845 = vunpack.c.l.b16 %v527
    %v846 = vunpack.c.h.b16 %v527
    %v847 = vunpack.c.l.b16 %v528
    %v848 = vunpack.c.h.b16 %v528
    %v849 = vpack.c.b16 %v663, %v657
    %v850 = vpack.c.b16 %v664, %v658
    %v851 = vpack.c.b16 %v665, %v659
    %v852 = vpack.c.b16 %v666, %v660
    %v853 = vpack.c.b16 %v667, %v661
    %v854 = vpack.c.b16 %v668, %v662
    %v855 = vpack.c.b16 %v675, %v669
    %v856 = vpack.c.b16 %v676, %v670
    %v857 = vpack.c.b16 %v677, %v671
    %v858 = vpack.c.b16 %v678, %v672
    %v859 = vpack.c.b16 %v679, %v673
    %v860 = vpack.c.b16 %v680, %v674
    %v861 = vpack.c.b16 %v687, %v681
    %v862 = vpack.c.b16 %v688, %v682
    %v863 = vpack.c.b16 %v689, %v683
    %v864 = vpack.c.b16 %v690, %v684
    %v865 = vpack.c.b16 %v691, %v685
    %v866 = vpack.c.b16 %v692, %v686
    %v867 = vpack.c.b16 %v699, %v693
    %v868 = vpack.c.b16 %v700, %v694
    %v869 = vpack.c.b16 %v701, %v695
    %v870 = vpack.c.b16 %v702, %v696
    %v871 = vpack.c.b16 %v703, %v697
    %v872 = vpack.c.b16 %v704, %v698
    %v873 = vpack.c.b16 %v711, %v705
    %v874 = vpack.c.b16 %v712, %v706
    %v875 = vpack.c.b16 %v713, %v707
    %v876 = vpack.c.b16 %v714, %v708
    %v877 = vpack.c.b16 %v715, %v709
    %v878 = vpack.c.b16 %v716, %v710
    %v879 = vpack.c.b16 %v723, %v717
    %v880 = vpack.c.b16 %v724, %v718
    %v881 = vpack.c.b16 %v725, %v719
    %v882 = vpack.c.b16 %v726, %v720
    %v883 = vpack.c.b16 %v727, %v721
    %v884 = vpack.c.b16 %v728, %v722
    %v885 = vpack.c.b16 %v735, %v729
    %v886 = vpack.c.b16 %v736, %v730
    %v887 = vpack.c.b16 %v737, %v731
    %v888 = vpack.c.b16 %v738, %v732
    %v889 = vpack.c.b16 %v739, %v733
    %v890 = vpack.c.b16 %v740, %v734
    %v891 = vpack.c.b16 %v747, %v741
    %v892 = vpack.c.b16 %v748, %v742
    %v893 = vpack.c.b16 %v749, %v743
    %v894 = vpack.c.b16 %v750, %v744
    %v895 = vpack.c.b16 %v751, %v745
    %v896 = vpack.c.b16 %v752, %v746
    %v897 = vpack.c.b16 %v759, %v753
    %v898 = vpack.c.b16 %v760, %v754
    %v899 = vpack.c.b16 %v761, %v755
    %v900 = vpack.c.b16 %v762, %v756
    %v901 = vpack.c.b16 %v763, %v757
    %v902 = vpack.c.b16 %v764, %v758
    %v903 = vpack.c.b16 %v771, %v765
    %v904 = vpack.c.b16 %v772, %v766
    %v905 = vpack.c.b16 %v773, %v767
    %v906 = vpack.c.b16 %v774, %v768
    %v907 = vpack.c.b16 %v775, %v769
    %v908 = vpack.c.b16 %v776, %v770
    %v909 = vpack.c.b16 %v783, %v777
    %v910 = vpack.c.b16 %v784, %v778
    %v911 = vpack.c.b16 %v785, %v779
    %v912 = vpack.c.b16 %v786, %v780
    %v913 = vpack.c.b16 %v787, %v781
    %v914 = vpack.c.b16 %v788, %v782
    %v915 = vpack.c.b16 %v795, %v789
    %v916 = vpack.c.b16 %v796, %v790
    %v917 = vpack.c.b16 %v797, %v791
    %v918 = vpack.c.b16 %v798, %v792
    %v919 = vpack.c.b16 %v799, %v793
    %v920 = vpack.c.b16 %v800, %v794
    %v921 = vpack.c.b16 %v807, %v801
    %v922 = vpack.c.b16 %v808, %v802
    %v923 = vpack.c.b16 %v809, %v803
    %v924 = vpack.c.b16 %v810, %v804
    %v925 = vpack.c.b16 %v811, %v805
    %v926 = vpack.c.b16 %v812, %v806
    %v927 = vpack.c.b16 %v819, %v813
    %v928 = vpack.c.b16 %v820, %v814
    %v929 = vpack.c.b16 %v821, %v815
    %v930 = vpack.c.b16 %v822, %v816
    %v931 = vpack.c.b16 %v823, %v817
    %v932 = vpack.c.b16 %v824, %v818
    %v933 = vpack.c.b16 %v831, %v825
    %v934 = vpack.c.b16 %v832, %v826
    %v935 = vpack.c.b16 %v833, %v827
    %v936 = vpack.c.b16 %v834, %v828
    %v937 = vpack.c.b16 %v835, %v829
    %v938 = vpack.c.b16 %v836, %v830
    %v939 = vpack.c.b16 %v843, %v837
    %v940 = vpack.c.b16 %v844, %v838
    %v941 = vpack.c.b16 %v845, %v839
    %v942 = vpack.c.b16 %v846, %v840
    %v943 = vpack.c.b16 %v847, %v841
    %v944 = vpack.c.b16 %v848, %v842
    %1041 = vmatprep.subr.bf16.mxu0 %v850
    %1042 = vmatpush1.bf16.msra.mxu0 %v849
    %1043 = vmatprep.subr.bf16.mxu0 %v856
    %1044 = vmatpush1.bf16.msra.mxu0 %v855
    %1045 = vmatprep.subr.bf16.mxu0 %v862
    %1046 = vmatpush1.bf16.msra.mxu0 %v861
    %1047 = vmatprep.subr.bf16.mxu0 %v868
    %1048 = vmatpush1.bf16.msra.mxu0 %v867
    %1049 = vmatprep.subr.bf16.mxu0 %v874
    %1050 = vmatpush1.bf16.msra.mxu0 %v873
    %1051 = vmatprep.subr.bf16.mxu0 %v880
    %1052 = vmatpush1.bf16.msra.mxu0 %v879
    %1053 = vmatprep.subr.bf16.mxu0 %v886
    %1054 = vmatpush1.bf16.msra.mxu0 %v885
    %1055 = vmatprep.subr.bf16.mxu0 %v892
    %1056 = vmatpush1.bf16.msra.mxu0 %v891
    %1057 = vmatprep.subr.bf16.mxu0 %v898
    %1058 = vmatpush1.bf16.msra.mxu0 %v897
    %1059 = vmatprep.subr.bf16.mxu0 %v904
    %1060 = vmatpush1.bf16.msra.mxu0 %v903
    %1061 = vmatprep.subr.bf16.mxu0 %v910
    %1062 = vmatpush1.bf16.msra.mxu0 %v909
    %1063 = vmatprep.subr.bf16.mxu0 %v916
    %1064 = vmatpush1.bf16.msra.mxu0 %v915
    %1065 = vmatprep.subr.bf16.mxu0 %v922
    %1066 = vmatpush1.bf16.msra.mxu0 %v921
    %1067 = vmatprep.subr.bf16.mxu0 %v928
    %1068 = vmatpush1.bf16.msra.mxu0 %v927
    %1069 = vmatprep.subr.bf16.mxu0 %v934
    %1070 = vmatpush1.bf16.msra.mxu0 %v933
    %1071 = vmatprep.subr.bf16.mxu0 %v940
    %1072 = vmatpush1.bf16.msra.mxu0 %v939
    %1073 = vmatprep.mubr.bf16.mxu0 %v432
    %1074 = vmatmul.mubr.bf16.gmra.mrb[0].mxu0 %v431
    %v1075 = vpop.f32.mrb[0].mxu0
    %v1076 = vadd.f32 %v534, %v1075
    %v1077 = vpop.f32.mrb[0].mxu0
    %v1078 = vadd.f32 %v538, %v1077
    %v1079 = vpop.f32.mrb[0].mxu0
    %v1080 = vpop.f32.mrb[0].mxu0
    %1081 = vdwg.mxu0
    %1082 = vmatprep.subr.bf16.mxu0 %v852
    %1083 = vmatpush1.bf16.msra.mxu0 %v851
    %1084 = vmatprep.subr.bf16.mxu0 %v858
    %1085 = vmatpush1.bf16.msra.mxu0 %v857
    %1086 = vmatprep.subr.bf16.mxu0 %v864
    %1087 = vmatpush1.bf16.msra.mxu0 %v863
    %1088 = vmatprep.subr.bf16.mxu0 %v870
    %1089 = vmatpush1.bf16.msra.mxu0 %v869
    %1090 = vmatprep.subr.bf16.mxu0 %v876
    %1091 = vmatpush1.bf16.msra.mxu0 %v875
    %1092 = vmatprep.subr.bf16.mxu0 %v882
    %1093 = vmatpush1.bf16.msra.mxu0 %v881
    %1094 = vmatprep.subr.bf16.mxu0 %v888
    %1095 = vmatpush1.bf16.msra.mxu0 %v887
    %1096 = vmatprep.subr.bf16.mxu0 %v894
    %1097 = vmatpush1.bf16.msra.mxu0 %v893
    %1098 = vmatprep.subr.bf16.mxu0 %v900
    %1099 = vmatpush1.bf16.msra.mxu0 %v899
    %1100 = vmatprep.subr.bf16.mxu0 %v906
    %1101 = vmatpush1.bf16.msra.mxu0 %v905
    %1102 = vmatprep.subr.bf16.mxu0 %v912
    %1103 = vmatpush1.bf16.msra.mxu0 %v911
    %1104 = vmatprep.subr.bf16.mxu0 %v918
    %1105 = vmatpush1.bf16.msra.mxu0 %v917
    %1106 = vmatprep.subr.bf16.mxu0 %v924
    %1107 = vmatpush1.bf16.msra.mxu0 %v923
    %1108 = vmatprep.subr.bf16.mxu0 %v930
    %1109 = vmatpush1.bf16.msra.mxu0 %v929
    %1110 = vmatprep.subr.bf16.mxu0 %v936
    %1111 = vmatpush1.bf16.msra.mxu0 %v935
    %1112 = vmatprep.subr.bf16.mxu0 %v942
    %1113 = vmatpush1.bf16.msra.mxu0 %v941
    %1114 = vmatprep.mubr.bf16.mxu0 %v432
    %1115 = vmatmul.mubr.bf16.gmra.mrb[0].mxu0 %v431
    %v1116 = vpop.f32.mrb[0].mxu0
    %v1117 = vadd.f32 %v542, %v1116
    %v1118 = vpop.f32.mrb[0].mxu0
    %v1119 = vadd.f32 %v546, %v1118
    %v1120 = vpop.f32.mrb[0].mxu0
    %v1121 = vpop.f32.mrb[0].mxu0
    %1122 = vdwg.mxu0
    %1123 = vmatprep.subr.bf16.mxu0 %v854
    %1124 = vmatpush1.bf16.msra.mxu0 %v853
    %1125 = vmatprep.subr.bf16.mxu0 %v860
    %1126 = vmatpush1.bf16.msra.mxu0 %v859
    %1127 = vmatprep.subr.bf16.mxu0 %v866
    %1128 = vmatpush1.bf16.msra.mxu0 %v865
    %1129 = vmatprep.subr.bf16.mxu0 %v872
    %1130 = vmatpush1.bf16.msra.mxu0 %v871
    %1131 = vmatprep.subr.bf16.mxu0 %v878
    %1132 = vmatpush1.bf16.msra.mxu0 %v877
    %1133 = vmatprep.subr.bf16.mxu0 %v884
    %1134 = vmatpush1.bf16.msra.mxu0 %v883
    %1135 = vmatprep.subr.bf16.mxu0 %v890
    %1136 = vmatpush1.bf16.msra.mxu0 %v889
    %1137 = vmatprep.subr.bf16.mxu0 %v896
    %1138 = vmatpush1.bf16.msra.mxu0 %v895
    %1139 = vmatprep.subr.bf16.mxu0 %v902
    %1140 = vmatpush1.bf16.msra.mxu0 %v901
    %1141 = vmatprep.subr.bf16.mxu0 %v908
    %1142 = vmatpush1.bf16.msra.mxu0 %v907
    %1143 = vmatprep.subr.bf16.mxu0 %v914
    %1144 = vmatpush1.bf16.msra.mxu0 %v913
    %1145 = vmatprep.subr.bf16.mxu0 %v920
    %1146 = vmatpush1.bf16.msra.mxu0 %v919
    %1147 = vmatprep.subr.bf16.mxu0 %v926
    %1148 = vmatpush1.bf16.msra.mxu0 %v925
    %1149 = vmatprep.subr.bf16.mxu0 %v932
    %1150 = vmatpush1.bf16.msra.mxu0 %v931
    %1151 = vmatprep.subr.bf16.mxu0 %v938
    %1152 = vmatpush1.bf16.msra.mxu0 %v937
    %1153 = vmatprep.subr.bf16.mxu0 %v944
    %1154 = vmatpush1.bf16.msra.mxu0 %v943
    %1155 = vmatprep.mubr.bf16.mxu0 %v432
    %1156 = vmatmul.mubr.bf16.gmra.mrb[0].mxu0 %v431
    %v1157 = vpop.f32.mrb[0].mxu0
    %v1158 = vadd.f32 %v550, %v1157
    %v1159 = vpop.f32.mrb[0].mxu0
    %v1160 = vadd.f32 %v554, %v1159
    %v1161 = vpop.f32.mrb[0].mxu0
    %v1162 = vpop.f32.mrb[0].mxu0
    %1163 = vdwg.mxu0
    %v1166 = vunpack.c.l.s4 1983009808
    %v1167 = vunpack.c.0.s8 %v1166
    %v1168 = vlaneseq
    %v1169 = vshrl.u32 %v1168, 7
    %v1170 = vsub.s32 %v1167, %v1169
    %v1171 = vrot.slane %v430, %v1170
    %v1172 = vcombine.high %v1171, %v1171
    %v1175 = vpack.c.bf16 %v1171, %v1171
    %v1176 = vpack.c.bf16 %v1172, %v1172
    %v1177 = vld [vmem:[#allocation9] sm:$0xff]
    %v1178 = vld [vmem:[#allocation9 + $0x8] sm:$0xff]
    %v1179 = vld [vmem:[#allocation9 + $0x10] sm:$0xff]
    %v1180 = vld [vmem:[#allocation9 + $0x18] sm:$0xff]
    %v1181 = vld [vmem:[#allocation9 + $0x20] sm:$0xff]
    %v1182 = vld [vmem:[#allocation9 + $0x28] sm:$0xff]
    %v1183 = vld [vmem:[#allocation9 + $0x30] sm:$0xff]
    %v1184 = vld [vmem:[#allocation9 + $0x38] sm:$0xff]
    %v1185 = vld [vmem:[#allocation9 + $0x40] sm:$0xff]
    %v1186 = vld [vmem:[#allocation9 + $0x48] sm:$0xff]
    %v1187 = vld [vmem:[#allocation9 + $0x50] sm:$0xff]
    %v1188 = vld [vmem:[#allocation9 + $0x58] sm:$0xff]
    %v1189 = vld [vmem:[#allocation9 + $0x60] sm:$0xff]
    %v1190 = vld [vmem:[#allocation9 + $0x68] sm:$0xff]
    %v1191 = vld [vmem:[#allocation9 + $0x70] sm:$0xff]
    %v1192 = vld [vmem:[#allocation9 + $0x78] sm:$0xff]
    %v1193 = vld [vmem:[#allocation9 + $0x80] sm:$0xff]
    %v1194 = vld [vmem:[#allocation9 + $0x88] sm:$0xff]
    %v1195 = vld [vmem:[#allocation9 + $0x90] sm:$0xff]
    %v1196 = vld [vmem:[#allocation9 + $0x98] sm:$0xff]
    %v1197 = vld [vmem:[#allocation9 + $0xa0] sm:$0xff]
    %v1198 = vld [vmem:[#allocation9 + $0xa8] sm:$0xff]
    %v1199 = vld [vmem:[#allocation9 + $0xb0] sm:$0xff]
    %v1200 = vld [vmem:[#allocation9 + $0xb8] sm:$0xff]
    %v1201 = vld [vmem:[#allocation9 + $0xc0] sm:$0xff]
    %v1202 = vld [vmem:[#allocation9 + $0xc8] sm:$0xff]
    %v1203 = vld [vmem:[#allocation9 + $0xd0] sm:$0xff]
    %v1204 = vld [vmem:[#allocation9 + $0xd8] sm:$0xff]
    %v1205 = vld [vmem:[#allocation9 + $0xe0] sm:$0xff]
    %v1206 = vld [vmem:[#allocation9 + $0xe8] sm:$0xff]
    %v1207 = vld [vmem:[#allocation9 + $0xf0] sm:$0xff]
    %v1208 = vld [vmem:[#allocation9 + $0xf8] sm:$0xff]
    %v1209 = vld [vmem:[#allocation9 + $0x100] sm:$0xff]
    %v1210 = vld [vmem:[#allocation9 + $0x108] sm:$0xff]
    %v1211 = vld [vmem:[#allocation9 + $0x110] sm:$0xff]
    %v1212 = vld [vmem:[#allocation9 + $0x118] sm:$0xff]
    %v1213 = vld [vmem:[#allocation9 + $0x120] sm:$0xff]
    %v1214 = vld [vmem:[#allocation9 + $0x128] sm:$0xff]
    %v1215 = vld [vmem:[#allocation9 + $0x130] sm:$0xff]
    %v1216 = vld [vmem:[#allocation9 + $0x138] sm:$0xff]
    %v1217 = vld [vmem:[#allocation9 + $0x140] sm:$0xff]
    %v1218 = vld [vmem:[#allocation9 + $0x148] sm:$0xff]
    %v1219 = vld [vmem:[#allocation9 + $0x150] sm:$0xff]
    %v1220 = vld [vmem:[#allocation9 + $0x158] sm:$0xff]
    %v1221 = vld [vmem:[#allocation9 + $0x160] sm:$0xff]
    %v1222 = vld [vmem:[#allocation9 + $0x168] sm:$0xff]
    %v1223 = vld [vmem:[#allocation9 + $0x170] sm:$0xff]
    %v1224 = vld [vmem:[#allocation9 + $0x178] sm:$0xff]
    %v1225 = vld [vmem:[#allocation9 + $0x180] sm:$0xff]
    %v1226 = vld [vmem:[#allocation9 + $0x188] sm:$0xff]
    %v1227 = vld [vmem:[#allocation9 + $0x190] sm:$0xff]
    %v1228 = vld [vmem:[#allocation9 + $0x198] sm:$0xff]
    %v1229 = vld [vmem:[#allocation9 + $0x1a0] sm:$0xff]
    %v1230 = vld [vmem:[#allocation9 + $0x1a8] sm:$0xff]
    %v1231 = vld [vmem:[#allocation9 + $0x1b0] sm:$0xff]
    %v1232 = vld [vmem:[#allocation9 + $0x1b8] sm:$0xff]
    %v1233 = vld [vmem:[#allocation9 + $0x1c0] sm:$0xff]
    %v1234 = vld [vmem:[#allocation9 + $0x1c8] sm:$0xff]
    %v1235 = vld [vmem:[#allocation9 + $0x1d0] sm:$0xff]
    %v1236 = vld [vmem:[#allocation9 + $0x1d8] sm:$0xff]
    %v1237 = vld [vmem:[#allocation9 + $0x1e0] sm:$0xff]
    %v1238 = vld [vmem:[#allocation9 + $0x1e8] sm:$0xff]
    %v1239 = vld [vmem:[#allocation9 + $0x1f0] sm:$0xff]
    %v1240 = vld [vmem:[#allocation9 + $0x1f8] sm:$0xff]
    %v1241 = vld [vmem:[#allocation9 + $0x200] sm:$0xff]
    %v1242 = vld [vmem:[#allocation9 + $0x208] sm:$0xff]
    %v1243 = vld [vmem:[#allocation9 + $0x210] sm:$0xff]
    %v1244 = vld [vmem:[#allocation9 + $0x218] sm:$0xff]
    %v1245 = vld [vmem:[#allocation9 + $0x220] sm:$0xff]
    %v1246 = vld [vmem:[#allocation9 + $0x228] sm:$0xff]
    %v1247 = vld [vmem:[#allocation9 + $0x230] sm:$0xff]
    %v1248 = vld [vmem:[#allocation9 + $0x238] sm:$0xff]
    %v1249 = vld [vmem:[#allocation9 + $0x240] sm:$0xff]
    %v1250 = vld [vmem:[#allocation9 + $0x248] sm:$0xff]
    %v1251 = vld [vmem:[#allocation9 + $0x250] sm:$0xff]
    %v1252 = vld [vmem:[#allocation9 + $0x258] sm:$0xff]
    %v1253 = vld [vmem:[#allocation9 + $0x260] sm:$0xff]
    %v1254 = vld [vmem:[#allocation9 + $0x268] sm:$0xff]
    %v1255 = vld [vmem:[#allocation9 + $0x270] sm:$0xff]
    %v1256 = vld [vmem:[#allocation9 + $0x278] sm:$0xff]
    %v1257 = vld [vmem:[#allocation9 + $0x280] sm:$0xff]
    %v1258 = vld [vmem:[#allocation9 + $0x288] sm:$0xff]
    %v1259 = vld [vmem:[#allocation9 + $0x290] sm:$0xff]
    %v1260 = vld [vmem:[#allocation9 + $0x298] sm:$0xff]
    %v1261 = vld [vmem:[#allocation9 + $0x2a0] sm:$0xff]
    %v1262 = vld [vmem:[#allocation9 + $0x2a8] sm:$0xff]
    %v1263 = vld [vmem:[#allocation9 + $0x2b0] sm:$0xff]
    %v1264 = vld [vmem:[#allocation9 + $0x2b8] sm:$0xff]
    %v1265 = vld [vmem:[#allocation9 + $0x2c0] sm:$0xff]
    %v1266 = vld [vmem:[#allocation9 + $0x2c8] sm:$0xff]
    %v1267 = vld [vmem:[#allocation9 + $0x2d0] sm:$0xff]
    %v1268 = vld [vmem:[#allocation9 + $0x2d8] sm:$0xff]
    %v1269 = vld [vmem:[#allocation9 + $0x2e0] sm:$0xff]
    %v1270 = vld [vmem:[#allocation9 + $0x2e8] sm:$0xff]
    %v1271 = vld [vmem:[#allocation9 + $0x2f0] sm:$0xff]
    %v1272 = vld [vmem:[#allocation9 + $0x2f8] sm:$0xff]
    %v1273 = vld [vmem:[%s16] sm:$0x3f]
    %v1275 = vlaneseq
    %v1276 = vshrl.u32 %v1275, 7
    %v1277 = vsub.s32 0, %v1276
    %v1278 = vrot.slane %v1273, %v1277
    %v1279 = vlaneseq
    %v1280 = vshrl.u32 %v1279, 7
    %v1281 = vsub.s32 1, %v1280
    %v1282 = vrot.slane %v1273, %v1281
    %v1283 = vlaneseq
    %v1284 = vshrl.u32 %v1283, 7
    %v1285 = vsub.s32 2, %v1284
    %v1286 = vrot.slane %v1273, %v1285
    %v1287 = vlaneseq
    %v1288 = vshrl.u32 %v1287, 7
    %v1289 = vsub.s32 3, %v1288
    %v1290 = vrot.slane %v1273, %v1289
    %v1291 = vlaneseq
    %v1292 = vshrl.u32 %v1291, 7
    %v1293 = vsub.s32 4, %v1292
    %v1294 = vrot.slane %v1273, %v1293
    %v1295 = vlaneseq
    %v1296 = vshrl.u32 %v1295, 7
    %v1297 = vsub.s32 5, %v1296
    %v1298 = vrot.slane %v1273, %v1297
    %v1401 = vunpack.c.l.b16 %v1177
    %v1402 = vunpack.c.h.b16 %v1177
    %v1403 = vunpack.c.l.b16 %v1178
    %v1404 = vunpack.c.h.b16 %v1178
    %v1405 = vunpack.c.l.b16 %v1179
    %v1406 = vunpack.c.h.b16 %v1179
    %v1407 = vunpack.c.l.b16 %v1180
    %v1408 = vunpack.c.h.b16 %v1180
    %v1409 = vunpack.c.l.b16 %v1181
    %v1410 = vunpack.c.h.b16 %v1181
    %v1411 = vunpack.c.l.b16 %v1182
    %v1412 = vunpack.c.h.b16 %v1182
    %v1413 = vunpack.c.l.b16 %v1183
    %v1414 = vunpack.c.h.b16 %v1183
    %v1415 = vunpack.c.l.b16 %v1184
    %v1416 = vunpack.c.h.b16 %v1184
    %v1417 = vunpack.c.l.b16 %v1185
    %v1418 = vunpack.c.h.b16 %v1185
    %v1419 = vunpack.c.l.b16 %v1186
    %v1420 = vunpack.c.h.b16 %v1186
    %v1421 = vunpack.c.l.b16 %v1187
    %v1422 = vunpack.c.h.b16 %v1187
    %v1423 = vunpack.c.l.b16 %v1188
    %v1424 = vunpack.c.h.b16 %v1188
    %v1425 = vunpack.c.l.b16 %v1189
    %v1426 = vunpack.c.h.b16 %v1189
    %v1427 = vunpack.c.l.b16 %v1190
    %v1428 = vunpack.c.h.b16 %v1190
    %v1429 = vunpack.c.l.b16 %v1191
    %v1430 = vunpack.c.h.b16 %v1191
    %v1431 = vunpack.c.l.b16 %v1192
    %v1432 = vunpack.c.h.b16 %v1192
    %v1433 = vunpack.c.l.b16 %v1193
    %v1434 = vunpack.c.h.b16 %v1193
    %v1435 = vunpack.c.l.b16 %v1194
    %v1436 = vunpack.c.h.b16 %v1194
    %v1437 = vunpack.c.l.b16 %v1195
    %v1438 = vunpack.c.h.b16 %v1195
    %v1439 = vunpack.c.l.b16 %v1196
    %v1440 = vunpack.c.h.b16 %v1196
    %v1441 = vunpack.c.l.b16 %v1197
    %v1442 = vunpack.c.h.b16 %v1197
    %v1443 = vunpack.c.l.b16 %v1198
    %v1444 = vunpack.c.h.b16 %v1198
    %v1445 = vunpack.c.l.b16 %v1199
    %v1446 = vunpack.c.h.b16 %v1199
    %v1447 = vunpack.c.l.b16 %v1200
    %v1448 = vunpack.c.h.b16 %v1200
    %v1449 = vunpack.c.l.b16 %v1201
    %v1450 = vunpack.c.h.b16 %v1201
    %v1451 = vunpack.c.l.b16 %v1202
    %v1452 = vunpack.c.h.b16 %v1202
    %v1453 = vunpack.c.l.b16 %v1203
    %v1454 = vunpack.c.h.b16 %v1203
    %v1455 = vunpack.c.l.b16 %v1204
    %v1456 = vunpack.c.h.b16 %v1204
    %v1457 = vunpack.c.l.b16 %v1205
    %v1458 = vunpack.c.h.b16 %v1205
    %v1459 = vunpack.c.l.b16 %v1206
    %v1460 = vunpack.c.h.b16 %v1206
    %v1461 = vunpack.c.l.b16 %v1207
    %v1462 = vunpack.c.h.b16 %v1207
    %v1463 = vunpack.c.l.b16 %v1208
    %v1464 = vunpack.c.h.b16 %v1208
    %v1465 = vunpack.c.l.b16 %v1209
    %v1466 = vunpack.c.h.b16 %v1209
    %v1467 = vunpack.c.l.b16 %v1210
    %v1468 = vunpack.c.h.b16 %v1210
    %v1469 = vunpack.c.l.b16 %v1211
    %v1470 = vunpack.c.h.b16 %v1211
    %v1471 = vunpack.c.l.b16 %v1212
    %v1472 = vunpack.c.h.b16 %v1212
    %v1473 = vunpack.c.l.b16 %v1213
    %v1474 = vunpack.c.h.b16 %v1213
    %v1475 = vunpack.c.l.b16 %v1214
    %v1476 = vunpack.c.h.b16 %v1214
    %v1477 = vunpack.c.l.b16 %v1215
    %v1478 = vunpack.c.h.b16 %v1215
    %v1479 = vunpack.c.l.b16 %v1216
    %v1480 = vunpack.c.h.b16 %v1216
    %v1481 = vunpack.c.l.b16 %v1217
    %v1482 = vunpack.c.h.b16 %v1217
    %v1483 = vunpack.c.l.b16 %v1218
    %v1484 = vunpack.c.h.b16 %v1218
    %v1485 = vunpack.c.l.b16 %v1219
    %v1486 = vunpack.c.h.b16 %v1219
    %v1487 = vunpack.c.l.b16 %v1220
    %v1488 = vunpack.c.h.b16 %v1220
    %v1489 = vunpack.c.l.b16 %v1221
    %v1490 = vunpack.c.h.b16 %v1221
    %v1491 = vunpack.c.l.b16 %v1222
    %v1492 = vunpack.c.h.b16 %v1222
    %v1493 = vunpack.c.l.b16 %v1223
    %v1494 = vunpack.c.h.b16 %v1223
    %v1495 = vunpack.c.l.b16 %v1224
    %v1496 = vunpack.c.h.b16 %v1224
    %v1497 = vunpack.c.l.b16 %v1225
    %v1498 = vunpack.c.h.b16 %v1225
    %v1499 = vunpack.c.l.b16 %v1226
    %v1500 = vunpack.c.h.b16 %v1226
    %v1501 = vunpack.c.l.b16 %v1227
    %v1502 = vunpack.c.h.b16 %v1227
    %v1503 = vunpack.c.l.b16 %v1228
    %v1504 = vunpack.c.h.b16 %v1228
    %v1505 = vunpack.c.l.b16 %v1229
    %v1506 = vunpack.c.h.b16 %v1229
    %v1507 = vunpack.c.l.b16 %v1230
    %v1508 = vunpack.c.h.b16 %v1230
    %v1509 = vunpack.c.l.b16 %v1231
    %v1510 = vunpack.c.h.b16 %v1231
    %v1511 = vunpack.c.l.b16 %v1232
    %v1512 = vunpack.c.h.b16 %v1232
    %v1513 = vunpack.c.l.b16 %v1233
    %v1514 = vunpack.c.h.b16 %v1233
    %v1515 = vunpack.c.l.b16 %v1234
    %v1516 = vunpack.c.h.b16 %v1234
    %v1517 = vunpack.c.l.b16 %v1235
    %v1518 = vunpack.c.h.b16 %v1235
    %v1519 = vunpack.c.l.b16 %v1236
    %v1520 = vunpack.c.h.b16 %v1236
    %v1521 = vunpack.c.l.b16 %v1237
    %v1522 = vunpack.c.h.b16 %v1237
    %v1523 = vunpack.c.l.b16 %v1238
    %v1524 = vunpack.c.h.b16 %v1238
    %v1525 = vunpack.c.l.b16 %v1239
    %v1526 = vunpack.c.h.b16 %v1239
    %v1527 = vunpack.c.l.b16 %v1240
    %v1528 = vunpack.c.h.b16 %v1240
    %v1529 = vunpack.c.l.b16 %v1241
    %v1530 = vunpack.c.h.b16 %v1241
    %v1531 = vunpack.c.l.b16 %v1242
    %v1532 = vunpack.c.h.b16 %v1242
    %v1533 = vunpack.c.l.b16 %v1243
    %v1534 = vunpack.c.h.b16 %v1243
    %v1535 = vunpack.c.l.b16 %v1244
    %v1536 = vunpack.c.h.b16 %v1244
    %v1537 = vunpack.c.l.b16 %v1245
    %v1538 = vunpack.c.h.b16 %v1245
    %v1539 = vunpack.c.l.b16 %v1246
    %v1540 = vunpack.c.h.b16 %v1246
    %v1541 = vunpack.c.l.b16 %v1247
    %v1542 = vunpack.c.h.b16 %v1247
    %v1543 = vunpack.c.l.b16 %v1248
    %v1544 = vunpack.c.h.b16 %v1248
    %v1545 = vunpack.c.l.b16 %v1249
    %v1546 = vunpack.c.h.b16 %v1249
    %v1547 = vunpack.c.l.b16 %v1250
    %v1548 = vunpack.c.h.b16 %v1250
    %v1549 = vunpack.c.l.b16 %v1251
    %v1550 = vunpack.c.h.b16 %v1251
    %v1551 = vunpack.c.l.b16 %v1252
    %v1552 = vunpack.c.h.b16 %v1252
    %v1553 = vunpack.c.l.b16 %v1253
    %v1554 = vunpack.c.h.b16 %v1253
    %v1555 = vunpack.c.l.b16 %v1254
    %v1556 = vunpack.c.h.b16 %v1254
    %v1557 = vunpack.c.l.b16 %v1255
    %v1558 = vunpack.c.h.b16 %v1255
    %v1559 = vunpack.c.l.b16 %v1256
    %v1560 = vunpack.c.h.b16 %v1256
    %v1561 = vunpack.c.l.b16 %v1257
    %v1562 = vunpack.c.h.b16 %v1257
    %v1563 = vunpack.c.l.b16 %v1258
    %v1564 = vunpack.c.h.b16 %v1258
    %v1565 = vunpack.c.l.b16 %v1259
    %v1566 = vunpack.c.h.b16 %v1259
    %v1567 = vunpack.c.l.b16 %v1260
    %v1568 = vunpack.c.h.b16 %v1260
    %v1569 = vunpack.c.l.b16 %v1261
    %v1570 = vunpack.c.h.b16 %v1261
    %v1571 = vunpack.c.l.b16 %v1262
    %v1572 = vunpack.c.h.b16 %v1262
    %v1573 = vunpack.c.l.b16 %v1263
    %v1574 = vunpack.c.h.b16 %v1263
    %v1575 = vunpack.c.l.b16 %v1264
    %v1576 = vunpack.c.h.b16 %v1264
    %v1577 = vunpack.c.l.b16 %v1265
    %v1578 = vunpack.c.h.b16 %v1265
    %v1579 = vunpack.c.l.b16 %v1266
    %v1580 = vunpack.c.h.b16 %v1266
    %v1581 = vunpack.c.l.b16 %v1267
    %v1582 = vunpack.c.h.b16 %v1267
    %v1583 = vunpack.c.l.b16 %v1268
    %v1584 = vunpack.c.h.b16 %v1268
    %v1585 = vunpack.c.l.b16 %v1269
    %v1586 = vunpack.c.h.b16 %v1269
    %v1587 = vunpack.c.l.b16 %v1270
    %v1588 = vunpack.c.h.b16 %v1270
    %v1589 = vunpack.c.l.b16 %v1271
    %v1590 = vunpack.c.h.b16 %v1271
    %v1591 = vunpack.c.l.b16 %v1272
    %v1592 = vunpack.c.h.b16 %v1272
    %v1593 = vpack.c.b16 %v1407, %v1401
    %v1594 = vpack.c.b16 %v1408, %v1402
    %v1595 = vpack.c.b16 %v1409, %v1403
    %v1596 = vpack.c.b16 %v1410, %v1404
    %v1597 = vpack.c.b16 %v1411, %v1405
    %v1598 = vpack.c.b16 %v1412, %v1406
    %v1599 = vpack.c.b16 %v1419, %v1413
    %v1600 = vpack.c.b16 %v1420, %v1414
    %v1601 = vpack.c.b16 %v1421, %v1415
    %v1602 = vpack.c.b16 %v1422, %v1416
    %v1603 = vpack.c.b16 %v1423, %v1417
    %v1604 = vpack.c.b16 %v1424, %v1418
    %v1605 = vpack.c.b16 %v1431, %v1425
    %v1606 = vpack.c.b16 %v1432, %v1426
    %v1607 = vpack.c.b16 %v1433, %v1427
    %v1608 = vpack.c.b16 %v1434, %v1428
    %v1609 = vpack.c.b16 %v1435, %v1429
    %v1610 = vpack.c.b16 %v1436, %v1430
    %v1611 = vpack.c.b16 %v1443, %v1437
    %v1612 = vpack.c.b16 %v1444, %v1438
    %v1613 = vpack.c.b16 %v1445, %v1439
    %v1614 = vpack.c.b16 %v1446, %v1440
    %v1615 = vpack.c.b16 %v1447, %v1441
    %v1616 = vpack.c.b16 %v1448, %v1442
    %v1617 = vpack.c.b16 %v1455, %v1449
    %v1618 = vpack.c.b16 %v1456, %v1450
    %v1619 = vpack.c.b16 %v1457, %v1451
    %v1620 = vpack.c.b16 %v1458, %v1452
    %v1621 = vpack.c.b16 %v1459, %v1453
    %v1622 = vpack.c.b16 %v1460, %v1454
    %v1623 = vpack.c.b16 %v1467, %v1461
    %v1624 = vpack.c.b16 %v1468, %v1462
    %v1625 = vpack.c.b16 %v1469, %v1463
    %v1626 = vpack.c.b16 %v1470, %v1464
    %v1627 = vpack.c.b16 %v1471, %v1465
    %v1628 = vpack.c.b16 %v1472, %v1466
    %v1629 = vpack.c.b16 %v1479, %v1473
    %v1630 = vpack.c.b16 %v1480, %v1474
    %v1631 = vpack.c.b16 %v1481, %v1475
    %v1632 = vpack.c.b16 %v1482, %v1476
    %v1633 = vpack.c.b16 %v1483, %v1477
    %v1634 = vpack.c.b16 %v1484, %v1478
    %v1635 = vpack.c.b16 %v1491, %v1485
    %v1636 = vpack.c.b16 %v1492, %v1486
    %v1637 = vpack.c.b16 %v1493, %v1487
    %v1638 = vpack.c.b16 %v1494, %v1488
    %v1639 = vpack.c.b16 %v1495, %v1489
    %v1640 = vpack.c.b16 %v1496, %v1490
    %v1641 = vpack.c.b16 %v1503, %v1497
    %v1642 = vpack.c.b16 %v1504, %v1498
    %v1643 = vpack.c.b16 %v1505, %v1499
    %v1644 = vpack.c.b16 %v1506, %v1500
    %v1645 = vpack.c.b16 %v1507, %v1501
    %v1646 = vpack.c.b16 %v1508, %v1502
    %v1647 = vpack.c.b16 %v1515, %v1509
    %v1648 = vpack.c.b16 %v1516, %v1510
    %v1649 = vpack.c.b16 %v1517, %v1511
    %v1650 = vpack.c.b16 %v1518, %v1512
    %v1651 = vpack.c.b16 %v1519, %v1513
    %v1652 = vpack.c.b16 %v1520, %v1514
    %v1653 = vpack.c.b16 %v1527, %v1521
    %v1654 = vpack.c.b16 %v1528, %v1522
    %v1655 = vpack.c.b16 %v1529, %v1523
    %v1656 = vpack.c.b16 %v1530, %v1524
    %v1657 = vpack.c.b16 %v1531, %v1525
    %v1658 = vpack.c.b16 %v1532, %v1526
    %v1659 = vpack.c.b16 %v1539, %v1533
    %v1660 = vpack.c.b16 %v1540, %v1534
    %v1661 = vpack.c.b16 %v1541, %v1535
    %v1662 = vpack.c.b16 %v1542, %v1536
    %v1663 = vpack.c.b16 %v1543, %v1537
    %v1664 = vpack.c.b16 %v1544, %v1538
    %v1665 = vpack.c.b16 %v1551, %v1545
    %v1666 = vpack.c.b16 %v1552, %v1546
    %v1667 = vpack.c.b16 %v1553, %v1547
    %v1668 = vpack.c.b16 %v1554, %v1548
    %v1669 = vpack.c.b16 %v1555, %v1549
    %v1670 = vpack.c.b16 %v1556, %v1550
    %v1671 = vpack.c.b16 %v1563, %v1557
    %v1672 = vpack.c.b16 %v1564, %v1558
    %v1673 = vpack.c.b16 %v1565, %v1559
    %v1674 = vpack.c.b16 %v1566, %v1560
    %v1675 = vpack.c.b16 %v1567, %v1561
    %v1676 = vpack.c.b16 %v1568, %v1562
    %v1677 = vpack.c.b16 %v1575, %v1569
    %v1678 = vpack.c.b16 %v1576, %v1570
    %v1679 = vpack.c.b16 %v1577, %v1571
    %v1680 = vpack.c.b16 %v1578, %v1572
    %v1681 = vpack.c.b16 %v1579, %v1573
    %v1682 = vpack.c.b16 %v1580, %v1574
    %v1683 = vpack.c.b16 %v1587, %v1581
    %v1684 = vpack.c.b16 %v1588, %v1582
    %v1685 = vpack.c.b16 %v1589, %v1583
    %v1686 = vpack.c.b16 %v1590, %v1584
    %v1687 = vpack.c.b16 %v1591, %v1585
    %v1688 = vpack.c.b16 %v1592, %v1586
    %1785 = vmatprep.subr.bf16.mxu0 %v1594
    %1786 = vmatpush1.bf16.msra.mxu0 %v1593
    %1787 = vmatprep.subr.bf16.mxu0 %v1600
    %1788 = vmatpush1.bf16.msra.mxu0 %v1599
    %1789 = vmatprep.subr.bf16.mxu0 %v1606
    %1790 = vmatpush1.bf16.msra.mxu0 %v1605
    %1791 = vmatprep.subr.bf16.mxu0 %v1612
    %1792 = vmatpush1.bf16.msra.mxu0 %v1611
    %1793 = vmatprep.subr.bf16.mxu0 %v1618
    %1794 = vmatpush1.bf16.msra.mxu0 %v1617
    %1795 = vmatprep.subr.bf16.mxu0 %v1624
    %1796 = vmatpush1.bf16.msra.mxu0 %v1623
    %1797 = vmatprep.subr.bf16.mxu0 %v1630
    %1798 = vmatpush1.bf16.msra.mxu0 %v1629
    %1799 = vmatprep.subr.bf16.mxu0 %v1636
    %1800 = vmatpush1.bf16.msra.mxu0 %v1635
    %1801 = vmatprep.subr.bf16.mxu0 %v1642
    %1802 = vmatpush1.bf16.msra.mxu0 %v1641
    %1803 = vmatprep.subr.bf16.mxu0 %v1648
    %1804 = vmatpush1.bf16.msra.mxu0 %v1647
    %1805 = vmatprep.subr.bf16.mxu0 %v1654
    %1806 = vmatpush1.bf16.msra.mxu0 %v1653
    %1807 = vmatprep.subr.bf16.mxu0 %v1660
    %1808 = vmatpush1.bf16.msra.mxu0 %v1659
    %1809 = vmatprep.subr.bf16.mxu0 %v1666
    %1810 = vmatpush1.bf16.msra.mxu0 %v1665
    %1811 = vmatprep.subr.bf16.mxu0 %v1672
    %1812 = vmatpush1.bf16.msra.mxu0 %v1671
    %1813 = vmatprep.subr.bf16.mxu0 %v1678
    %1814 = vmatpush1.bf16.msra.mxu0 %v1677
    %1815 = vmatprep.subr.bf16.mxu0 %v1684
    %1816 = vmatpush1.bf16.msra.mxu0 %v1683
    %1817 = vmatprep.mubr.bf16.mxu0 %v1176
    %1818 = vmatmul.mubr.bf16.gmra.mrb[0].mxu0 %v1175
    %v1819 = vpop.f32.mrb[0].mxu0
    %v1820 = vadd.f32 %v1278, %v1819
    %v1821 = vpop.f32.mrb[0].mxu0
    %v1822 = vadd.f32 %v1282, %v1821
    %v1823 = vpop.f32.mrb[0].mxu0
    %v1824 = vpop.f32.mrb[0].mxu0
    %1825 = vdwg.mxu0
    %1826 = vmatprep.subr.bf16.mxu0 %v1596
    %1827 = vmatpush1.bf16.msra.mxu0 %v1595
    %1828 = vmatprep.subr.bf16.mxu0 %v1602
    %1829 = vmatpush1.bf16.msra.mxu0 %v1601
    %1830 = vmatprep.subr.bf16.mxu0 %v1608
    %1831 = vmatpush1.bf16.msra.mxu0 %v1607
    %1832 = vmatprep.subr.bf16.mxu0 %v1614
    %1833 = vmatpush1.bf16.msra.mxu0 %v1613
    %1834 = vmatprep.subr.bf16.mxu0 %v1620
    %1835 = vmatpush1.bf16.msra.mxu0 %v1619
    %1836 = vmatprep.subr.bf16.mxu0 %v1626
    %1837 = vmatpush1.bf16.msra.mxu0 %v1625
    %1838 = vmatprep.subr.bf16.mxu0 %v1632
    %1839 = vmatpush1.bf16.msra.mxu0 %v1631
    %1840 = vmatprep.subr.bf16.mxu0 %v1638
    %1841 = vmatpush1.bf16.msra.mxu0 %v1637
    %1842 = vmatprep.subr.bf16.mxu0 %v1644
    %1843 = vmatpush1.bf16.msra.mxu0 %v1643
    %1844 = vmatprep.subr.bf16.mxu0 %v1650
    %1845 = vmatpush1.bf16.msra.mxu0 %v1649
    %1846 = vmatprep.subr.bf16.mxu0 %v1656
    %1847 = vmatpush1.bf16.msra.mxu0 %v1655
    %1848 = vmatprep.subr.bf16.mxu0 %v1662
    %1849 = vmatpush1.bf16.msra.mxu0 %v1661
    %1850 = vmatprep.subr.bf16.mxu0 %v1668
    %1851 = vmatpush1.bf16.msra.mxu0 %v1667
    %1852 = vmatprep.subr.bf16.mxu0 %v1674
    %1853 = vmatpush1.bf16.msra.mxu0 %v1673
    %1854 = vmatprep.subr.bf16.mxu0 %v1680
    %1855 = vmatpush1.bf16.msra.mxu0 %v1679
    %1856 = vmatprep.subr.bf16.mxu0 %v1686
    %1857 = vmatpush1.bf16.msra.mxu0 %v1685
    %1858 = vmatprep.mubr.bf16.mxu0 %v1176
    %1859 = vmatmul.mubr.bf16.gmra.mrb[0].mxu0 %v1175
    %v1860 = vpop.f32.mrb[0].mxu0
    %v1861 = vadd.f32 %v1286, %v1860
    %v1862 = vpop.f32.mrb[0].mxu0
    %v1863 = vadd.f32 %v1290, %v1862
    %v1864 = vpop.f32.mrb[0].mxu0
    %v1865 = vpop.f32.mrb[0].mxu0
    %1866 = vdwg.mxu0
    %1867 = vmatprep.subr.bf16.mxu0 %v1598
    %1868 = vmatpush1.bf16.msra.mxu0 %v1597
    %1869 = vmatprep.subr.bf16.mxu0 %v1604
    %1870 = vmatpush1.bf16.msra.mxu0 %v1603
    %1871 = vmatprep.subr.bf16.mxu0 %v1610
    %1872 = vmatpush1.bf16.msra.mxu0 %v1609
    %1873 = vmatprep.subr.bf16.mxu0 %v1616
    %1874 = vmatpush1.bf16.msra.mxu0 %v1615
    %1875 = vmatprep.subr.bf16.mxu0 %v1622
    %1876 = vmatpush1.bf16.msra.mxu0 %v1621
    %1877 = vmatprep.subr.bf16.mxu0 %v1628
    %1878 = vmatpush1.bf16.msra.mxu0 %v1627
    %1879 = vmatprep.subr.bf16.mxu0 %v1634
    %1880 = vmatpush1.bf16.msra.mxu0 %v1633
    %1881 = vmatprep.subr.bf16.mxu0 %v1640
    %1882 = vmatpush1.bf16.msra.mxu0 %v1639
    %1883 = vmatprep.subr.bf16.mxu0 %v1646
    %1884 = vmatpush1.bf16.msra.mxu0 %v1645
    %1885 = vmatprep.subr.bf16.mxu0 %v1652
    %1886 = vmatpush1.bf16.msra.mxu0 %v1651
    %1887 = vmatprep.subr.bf16.mxu0 %v1658
    %1888 = vmatpush1.bf16.msra.mxu0 %v1657
    %1889 = vmatprep.subr.bf16.mxu0 %v1664
    %1890 = vmatpush1.bf16.msra.mxu0 %v1663
    %1891 = vmatprep.subr.bf16.mxu0 %v1670
    %1892 = vmatpush1.bf16.msra.mxu0 %v1669
    %1893 = vmatprep.subr.bf16.mxu0 %v1676
    %1894 = vmatpush1.bf16.msra.mxu0 %v1675
    %1895 = vmatprep.subr.bf16.mxu0 %v1682
    %1896 = vmatpush1.bf16.msra.mxu0 %v1681
    %1897 = vmatprep.subr.bf16.mxu0 %v1688
    %1898 = vmatpush1.bf16.msra.mxu0 %v1687
    %1899 = vmatprep.mubr.bf16.mxu0 %v1176
    %1900 = vmatmul.mubr.bf16.gmra.mrb[0].mxu0 %v1175
    %v1901 = vpop.f32.mrb[0].mxu0
    %v1902 = vadd.f32 %v1294, %v1901
    %v1903 = vpop.f32.mrb[0].mxu0
    %v1904 = vadd.f32 %v1298, %v1903
    %v1905 = vpop.f32.mrb[0].mxu0
    %v1906 = vpop.f32.mrb[0].mxu0
    %1907 = vdwg.mxu0
    %v1908 = vadd.f32 %v1076, %v1820
    %v1909 = vadd.f32 %v1078, %v1822
    %v1910 = vxor.u32 %v1908, 2147483648
    %v1911 = vxor.u32 %v1909, 2147483648
    %v1912 = vmul.f32 %v1910, 1.442695
    %v1913 = vpow.pop %v1912
    %v1914 = vmul.f32 %v1911, 1.442695
    %v1915 = vpow.pop %v1914
    %v1916 = vadd.f32 %v1913, 1.0
    %v1917 = vadd.f32 %v1915, 1.0
    %v1918 = vrcp.pop %v1916
    %v1919 = vmul.f32 1.0, %v1918
    %v1920 = vrcp.pop %v1917
    %v1921 = vmul.f32 1.0, %v1920
    %v1922 = vadd.f32 %v1117, %v1861
    %v1923 = vadd.f32 %v1119, %v1863
    %v1924 = vxor.u32 %v1922, 2147483648
    %v1925 = vxor.u32 %v1923, 2147483648
    %v1926 = vmul.f32 %v1924, 1.442695
    %v1927 = vpow.pop %v1926
    %v1928 = vmul.f32 %v1925, 1.442695
    %v1929 = vpow.pop %v1928
    %v1930 = vadd.f32 %v1927, 1.0
    %v1931 = vadd.f32 %v1929, 1.0
    %v1932 = vrcp.pop %v1930
    %v1933 = vmul.f32 1.0, %v1932
    %v1934 = vrcp.pop %v1931
    %v1935 = vmul.f32 1.0, %v1934
    %v1936 = vmul.f32 %v1919, %v1902
    %v1937 = vmul.f32 %v1921, %v1904
    %v1938 = vadd.f32 %v1158, %v1936
    %v1939 = vadd.f32 %v1160, %v1937
    %v1940 = vtanh.pop %v1938
    %v1941 = vtanh.pop %v1939
    %v1942 = vsub.f32 1.0, %v1933
    %v1943 = vsub.f32 1.0, %v1935
    %v1944 = vmul.f32 %v1942, %v1940
    %v1945 = vmul.f32 %v1943, %v1941
    %v1946 = vmul.f32 %v1933, %v1171
    %v1947 = vmul.f32 %v1935, %v1172
    %v1948 = vadd.f32 %v1944, %v1946
    %v1949 = vadd.f32 %v1945, %v1947
    %v1952 = vcombine.low %v1948, %v1949
    %v1954 = vunpack.c.l.s4 1983009808
    %v1955 = vunpack.c.0.s8 %v1954
    %v1956 = vlaneseq
    %v1957 = vshrl.u32 %v1956, 7
    %v1958 = vsub.s32 %v1955, %v1957
    %v1959 = vrot.slane %v1952, %v1958
    %1961 = vst [vmem:[%s21] sm:$0xf] %v1959
    %v1962 = vpack.c.bf16 %v1948, %v1948
    %v1963 = vpack.c.bf16 %v1949, %v1949
    %v1964 = vld [vmem:[#allocation10] sm:$0xff]
    %v1965 = vld [vmem:[#allocation10 + $0x8] sm:$0xff]
    %v1966 = vld [vmem:[#allocation10 + $0x10] sm:$0xff]
    %v1967 = vld [vmem:[#allocation10 + $0x18] sm:$0xff]
    %v1968 = vld [vmem:[#allocation10 + $0x20] sm:$0xff]
    %v1969 = vld [vmem:[#allocation10 + $0x28] sm:$0xff]
    %v1970 = vld [vmem:[#allocation10 + $0x30] sm:$0xff]
    %v1971 = vld [vmem:[#allocation10 + $0x38] sm:$0xff]
    %v1972 = vld [vmem:[#allocation10 + $0x40] sm:$0xff]
    %v1973 = vld [vmem:[#allocation10 + $0x48] sm:$0xff]
    %v1974 = vld [vmem:[#allocation10 + $0x50] sm:$0xff]
    %v1975 = vld [vmem:[#allocation10 + $0x58] sm:$0xff]
    %v1976 = vld [vmem:[#allocation10 + $0x60] sm:$0xff]
    %v1977 = vld [vmem:[#allocation10 + $0x68] sm:$0xff]
    %v1978 = vld [vmem:[#allocation10 + $0x70] sm:$0xff]
    %v1979 = vld [vmem:[#allocation10 + $0x78] sm:$0xff]
    %v1980 = vld [vmem:[#allocation10 + $0x80] sm:$0xff]
    %v1981 = vld [vmem:[#allocation10 + $0x88] sm:$0xff]
    %v1982 = vld [vmem:[#allocation10 + $0x90] sm:$0xff]
    %v1983 = vld [vmem:[#allocation10 + $0x98] sm:$0xff]
    %v1984 = vld [vmem:[#allocation10 + $0xa0] sm:$0xff]
    %v1985 = vld [vmem:[#allocation10 + $0xa8] sm:$0xff]
    %v1986 = vld [vmem:[#allocation10 + $0xb0] sm:$0xff]
    %v1987 = vld [vmem:[#allocation10 + $0xb8] sm:$0xff]
    %v1988 = vld [vmem:[#allocation10 + $0xc0] sm:$0xff]
    %v1989 = vld [vmem:[#allocation10 + $0xc8] sm:$0xff]
    %v1990 = vld [vmem:[#allocation10 + $0xd0] sm:$0xff]
    %v1991 = vld [vmem:[#allocation10 + $0xd8] sm:$0xff]
    %v1992 = vld [vmem:[#allocation10 + $0xe0] sm:$0xff]
    %v1993 = vld [vmem:[#allocation10 + $0xe8] sm:$0xff]
    %v1994 = vld [vmem:[#allocation10 + $0xf0] sm:$0xff]
    %v1995 = vld [vmem:[#allocation10 + $0xf8] sm:$0xff]
    %v1996 = vld [vmem:[%s18] sm:$0x3]
    %v1998 = vlaneseq
    %v1999 = vshrl.u32 %v1998, 7
    %v2000 = vsub.s32 0, %v1999
    %v2001 = vrot.slane %v1996, %v2000
    %v2002 = vlaneseq
    %v2003 = vshrl.u32 %v2002, 7
    %v2004 = vsub.s32 1, %v2003
    %v2005 = vrot.slane %v1996, %v2004
    %v2040 = vunpack.c.l.b16 %v1964
    %v2041 = vunpack.c.h.b16 %v1964
    %v2042 = vunpack.c.l.b16 %v1965
    %v2043 = vunpack.c.h.b16 %v1965
    %v2044 = vunpack.c.l.b16 %v1966
    %v2045 = vunpack.c.h.b16 %v1966
    %v2046 = vunpack.c.l.b16 %v1967
    %v2047 = vunpack.c.h.b16 %v1967
    %v2048 = vunpack.c.l.b16 %v1968
    %v2049 = vunpack.c.h.b16 %v1968
    %v2050 = vunpack.c.l.b16 %v1969
    %v2051 = vunpack.c.h.b16 %v1969
    %v2052 = vunpack.c.l.b16 %v1970
    %v2053 = vunpack.c.h.b16 %v1970
    %v2054 = vunpack.c.l.b16 %v1971
    %v2055 = vunpack.c.h.b16 %v1971
    %v2056 = vunpack.c.l.b16 %v1972
    %v2057 = vunpack.c.h.b16 %v1972
    %v2058 = vunpack.c.l.b16 %v1973
    %v2059 = vunpack.c.h.b16 %v1973
    %v2060 = vunpack.c.l.b16 %v1974
    %v2061 = vunpack.c.h.b16 %v1974
    %v2062 = vunpack.c.l.b16 %v1975
    %v2063 = vunpack.c.h.b16 %v1975
    %v2064 = vunpack.c.l.b16 %v1976
    %v2065 = vunpack.c.h.b16 %v1976
    %v2066 = vunpack.c.l.b16 %v1977
    %v2067 = vunpack.c.h.b16 %v1977
    %v2068 = vunpack.c.l.b16 %v1978
    %v2069 = vunpack.c.h.b16 %v1978
    %v2070 = vunpack.c.l.b16 %v1979
    %v2071 = vunpack.c.h.b16 %v1979
    %v2072 = vunpack.c.l.b16 %v1980
    %v2073 = vunpack.c.h.b16 %v1980
    %v2074 = vunpack.c.l.b16 %v1981
    %v2075 = vunpack.c.h.b16 %v1981
    %v2076 = vunpack.c.l.b16 %v1982
    %v2077 = vunpack.c.h.b16 %v1982
    %v2078 = vunpack.c.l.b16 %v1983
    %v2079 = vunpack.c.h.b16 %v1983
    %v2080 = vunpack.c.l.b16 %v1984
    %v2081 = vunpack.c.h.b16 %v1984
    %v2082 = vunpack.c.l.b16 %v1985
    %v2083 = vunpack.c.h.b16 %v1985
    %v2084 = vunpack.c.l.b16 %v1986
    %v2085 = vunpack.c.h.b16 %v1986
    %v2086 = vunpack.c.l.b16 %v1987
    %v2087 = vunpack.c.h.b16 %v1987
    %v2088 = vunpack.c.l.b16 %v1988
    %v2089 = vunpack.c.h.b16 %v1988
    %v2090 = vunpack.c.l.b16 %v1989
    %v2091 = vunpack.c.h.b16 %v1989
    %v2092 = vunpack.c.l.b16 %v1990
    %v2093 = vunpack.c.h.b16 %v1990
    %v2094 = vunpack.c.l.b16 %v1991
    %v2095 = vunpack.c.h.b16 %v1991
    %v2096 = vunpack.c.l.b16 %v1992
    %v2097 = vunpack.c.h.b16 %v1992
    %v2098 = vunpack.c.l.b16 %v1993
    %v2099 = vunpack.c.h.b16 %v1993
    %v2100 = vunpack.c.l.b16 %v1994
    %v2101 = vunpack.c.h.b16 %v1994
    %v2102 = vunpack.c.l.b16 %v1995
    %v2103 = vunpack.c.h.b16 %v1995
    %v2104 = vpack.c.b16 %v2042, %v2040
    %v2105 = vpack.c.b16 %v2043, %v2041
    %v2106 = vpack.c.b16 %v2046, %v2044
    %v2107 = vpack.c.b16 %v2047, %v2045
    %v2108 = vpack.c.b16 %v2050, %v2048
    %v2109 = vpack.c.b16 %v2051, %v2049
    %v2110 = vpack.c.b16 %v2054, %v2052
    %v2111 = vpack.c.b16 %v2055, %v2053
    %v2112 = vpack.c.b16 %v2058, %v2056
    %v2113 = vpack.c.b16 %v2059, %v2057
    %v2114 = vpack.c.b16 %v2062, %v2060
    %v2115 = vpack.c.b16 %v2063, %v2061
    %v2116 = vpack.c.b16 %v2066, %v2064
    %v2117 = vpack.c.b16 %v2067, %v2065
    %v2118 = vpack.c.b16 %v2070, %v2068
    %v2119 = vpack.c.b16 %v2071, %v2069
    %v2120 = vpack.c.b16 %v2074, %v2072
    %v2121 = vpack.c.b16 %v2075, %v2073
    %v2122 = vpack.c.b16 %v2078, %v2076
    %v2123 = vpack.c.b16 %v2079, %v2077
    %v2124 = vpack.c.b16 %v2082, %v2080
    %v2125 = vpack.c.b16 %v2083, %v2081
    %v2126 = vpack.c.b16 %v2086, %v2084
    %v2127 = vpack.c.b16 %v2087, %v2085
    %v2128 = vpack.c.b16 %v2090, %v2088
    %v2129 = vpack.c.b16 %v2091, %v2089
    %v2130 = vpack.c.b16 %v2094, %v2092
    %v2131 = vpack.c.b16 %v2095, %v2093
    %v2132 = vpack.c.b16 %v2098, %v2096
    %v2133 = vpack.c.b16 %v2099, %v2097
    %v2134 = vpack.c.b16 %v2102, %v2100
    %v2135 = vpack.c.b16 %v2103, %v2101
    %2168 = vmatprep.subr.bf16.mxu0 %v2105
    %2169 = vmatpush1.bf16.msra.mxu0 %v2104
    %2170 = vmatprep.subr.bf16.mxu0 %v2107
    %2171 = vmatpush1.bf16.msra.mxu0 %v2106
    %2172 = vmatprep.subr.bf16.mxu0 %v2109
    %2173 = vmatpush1.bf16.msra.mxu0 %v2108
    %2174 = vmatprep.subr.bf16.mxu0 %v2111
    %2175 = vmatpush1.bf16.msra.mxu0 %v2110
    %2176 = vmatprep.subr.bf16.mxu0 %v2113
    %2177 = vmatpush1.bf16.msra.mxu0 %v2112
    %2178 = vmatprep.subr.bf16.mxu0 %v2115
    %2179 = vmatpush1.bf16.msra.mxu0 %v2114
    %2180 = vmatprep.subr.bf16.mxu0 %v2117
    %2181 = vmatpush1.bf16.msra.mxu0 %v2116
    %2182 = vmatprep.subr.bf16.mxu0 %v2119
    %2183 = vmatpush1.bf16.msra.mxu0 %v2118
    %2184 = vmatprep.subr.bf16.mxu0 %v2121
    %2185 = vmatpush1.bf16.msra.mxu0 %v2120
    %2186 = vmatprep.subr.bf16.mxu0 %v2123
    %2187 = vmatpush1.bf16.msra.mxu0 %v2122
    %2188 = vmatprep.subr.bf16.mxu0 %v2125
    %2189 = vmatpush1.bf16.msra.mxu0 %v2124
    %2190 = vmatprep.subr.bf16.mxu0 %v2127
    %2191 = vmatpush1.bf16.msra.mxu0 %v2126
    %2192 = vmatprep.subr.bf16.mxu0 %v2129
    %2193 = vmatpush1.bf16.msra.mxu0 %v2128
    %2194 = vmatprep.subr.bf16.mxu0 %v2131
    %2195 = vmatpush1.bf16.msra.mxu0 %v2130
    %2196 = vmatprep.subr.bf16.mxu0 %v2133
    %2197 = vmatpush1.bf16.msra.mxu0 %v2132
    %2198 = vmatprep.subr.bf16.mxu0 %v2135
    %2199 = vmatpush1.bf16.msra.mxu0 %v2134
    %2200 = vmatprep.mubr.bf16.mxu0 %v1963
    %2201 = vmatmul.mubr.bf16.gmra.mrb[0].mxu0 %v1962
    %v2202 = vpop.f32.mrb[0].mxu0
    %v2203 = vadd.f32 %v2001, %v2202
    %v2204 = vpop.f32.mrb[0].mxu0
    %v2205 = vadd.f32 %v2005, %v2204
    %v2206 = vpop.f32.mrb[0].mxu0
    %v2207 = vpop.f32.mrb[0].mxu0
    %2208 = vdwg.mxu0
    %v2211 = vcombine.low %v2203, %v2205
    %v2213 = vunpack.c.l.s4 1983009808
    %v2214 = vunpack.c.0.s8 %v2213
    %v2215 = vlaneseq
    %v2216 = vshrl.u32 %v2215, 7
    %v2217 = vsub.s32 %v2214, %v2216
    %v2218 = vrot.slane %v2211, %v2217
    %2220 = vst [vmem:[%s20] sm:$0xf] %v2218
    // Predicated region
    $region110: #{_step_impl.1} parent=1 // pred_check
      _
    $region111: #{_step_impl.1} parent=1 // pred_check_branch
      %2222 = sbr.rel (0) target = $region113
    $region112: #{_step_impl.1} parent=1 // pred_region
      _
    $region113: #{_step_impl.1} parent=1 // pred_fallthru
      _
    // Predicated region
    $region114: #{_step_impl.1} parent=1 // pred_check
      _
    $region115: #{_step_impl.1} parent=1 // pred_check_branch
      %2224 = sbr.rel (0) target = $region117
    $region116: #{_step_impl.1} parent=1 // pred_region
      _
    $region117: #{_step_impl.1} parent=1 // pred_fallthru
      _
    // Predicated region
    $region118: #{_step_impl.1} parent=1 // pred_check
      _
    $region119: #{_step_impl.1} parent=1 // pred_check_branch
      %2226 = sbr.rel (0) target = $region121
    $region120: #{_step_impl.1} parent=1 // pred_region
      _
    $region121: #{_step_impl.1} parent=1 // pred_fallthru
      _
    // Predicated region
    $region122: #{_step_impl.1} parent=1 // pred_check
      _
    $region123: #{_step_impl.1} parent=1 // pred_check_branch
      %2228 = sbr.rel (0) target = $region125
    $region124: #{_step_impl.1} parent=1 // pred_region
      _
    $region125: #{_step_impl.1} parent=1 // pred_fallthru
      _
    %2229 = vsyncpa [#allocation3], 1
    %2230 = vsyncpa [#allocation5], 1
    %2231 = vsyncpa [#allocation8], 1
    %2232 = vsyncpa [#allocation11], 1

</llo_original>
